<compile_context>
chip_gen: v6e
topology: v6e:2x2x1
jax: 0.10.0
libtpu: 0.0.40
codegen_flags: <defaults>
</compile_context>

<pallas_src>
import functools

import jax
import jax.numpy as jnp
from jax import lax
from jax.experimental import pallas as pl
from jax.experimental.pallas import tpu as pltpu


# ----------------------------------------------------------------------------
# VMEM budgeting
# ----------------------------------------------------------------------------
def _vmem_limit_bytes():
    """Explicit scoped-VMEM limit sized per TPU generation (v7x: 64 MiB phys)."""
    try:
        cap = int(pltpu.get_tpu_info().vmem_capacity_bytes)
    except Exception:
        cap = 64 << 20  # conservative fallback (v7x physical per-core VMEM)
    return max(32 << 20, min(cap // 2, 96 << 20))


def _pick_time_block(T, Bp, H, vmem_limit, cap=128):
    """Largest TT whose double-buffered bf16 in/out slabs fit the VMEM budget."""
    # per TT step: 2 dirs x 2 buffers x (Bp*4H input + Bp*H output) x 2 bytes
    per_tt = 40 * Bp * H
    # resident: 2 dirs x 2 buffers of (H,4H) bf16 weights + 4 f32 (Bp,H) scratch
    fixed = 32 * H * H + 16 * Bp * H
    avail = int(0.75 * vmem_limit) - fixed
    return int(max(1, min(T, cap, avail // per_tt)))


# ----------------------------------------------------------------------------
# Pallas kernel: one bidirectional LSTM layer, time-blocked recurrence.
# ----------------------------------------------------------------------------
def _bilstm_layer_kernel(xpf_ref, xpb_ref, whhf_ref, whhb_ref,
                         outf_ref, outb_ref,
                         hf_st, cf_st, hb_st, cb_st,
                         *, hidden_dim, time_block, unroll):
    H = hidden_dim
    TT = time_block

    # zero-initialize both directions' recurrent state at the first grid step
    @pl.when(pl.program_id(0) == 0)
    def _():
        hf_st[...] = jnp.zeros_like(hf_st)
        cf_st[...] = jnp.zeros_like(cf_st)
        hb_st[...] = jnp.zeros_like(hb_st)
        cb_st[...] = jnp.zeros_like(cb_st)

    def cell(xp_row, h, c, whh_ref):
        # xp_row (bf16) already holds x_t @ W_ih^T + b_ih + b_hh.
        # Recurrent matmul: bf16 operands, f32 accumulate; gate math in f32.
        gates = (jnp.dot(h.astype(jnp.bfloat16), whh_ref[...],
                         preferred_element_type=jnp.float32)
                 + xp_row.astype(jnp.float32))
        # gate order after host-side reorder: (i, f, o, g)
        sig = jax.nn.sigmoid(gates[:, 0:3 * H])
        i = sig[:, 0 * H:1 * H]
        f = sig[:, 1 * H:2 * H]
        o = sig[:, 2 * H:3 * H]
        g = jnp.tanh(gates[:, 3 * H:4 * H])
        c_new = f * c + i * g
        h_new = o * jnp.tanh(c_new)
        return h_new, c_new

    def body(s, carry):
        h_f, c_f, h_b, c_b = carry
        # forward direction: local time index s of this block
        h_f, c_f = cell(xpf_ref[s], h_f, c_f, whhf_ref)
        outf_ref[s] = h_f.astype(outf_ref.dtype)
        # backward direction: mirrored local index of the mirrored block
        sb = TT - 1 - s
        h_b, c_b = cell(xpb_ref[sb], h_b, c_b, whhb_ref)
        outb_ref[sb] = h_b.astype(outb_ref.dtype)
        return h_f, c_f, h_b, c_b

    h_f, c_f, h_b, c_b = lax.fori_loop(
        0, TT, body,
        (hf_st[...], cf_st[...], hb_st[...], cb_st[...]),
        unroll=unroll)

    hf_st[...] = h_f
    cf_st[...] = c_f
    hb_st[...] = h_b
    cb_st[...] = c_b


# ----------------------------------------------------------------------------
# Host-side wrappers
# ----------------------------------------------------------------------------
def _reorder_gates(w_ih, w_hh, b_ih, b_hh, H):
    """PyTorch gate row order (i, f, g, o) -> (i, f, o, g)."""
    idx = jnp.concatenate([jnp.arange(0, 2 * H),
                           jnp.arange(3 * H, 4 * H),
                           jnp.arange(2 * H, 3 * H)])
    return w_ih[idx], w_hh[idx], b_ih[idx], b_hh[idx]


def _prep_dir_params(p, H):
    w_ih, w_hh, b_ih, b_hh = _reorder_gates(*p, H)
    wih_t = jnp.transpose(w_ih)                       # (in_dim, 4H) f32
    whh_t = jnp.transpose(w_hh).astype(jnp.bfloat16)  # (H, 4H) bf16
    bias = (b_ih + b_hh).astype(jnp.float32)          # (4H,)
    return wih_t, whh_t, bias


def _proj_from_x(x_tbd, wih_t_f, wih_t_b, bias_f, bias_b):
    """Layer-0 projection, both directions fused: (T,B,D) -> (2,T,B,4H)."""
    w = jnp.stack([wih_t_f, wih_t_b], axis=0).astype(jnp.bfloat16)   # (2, D, 4H)
    bias = jnp.stack([bias_f, bias_b], axis=0)                        # (2, 4H)
    xp = jnp.einsum('tbd,kdg->ktbg', x_tbd.astype(jnp.bfloat16), w,
                    preferred_element_type=jnp.float32)
    return xp + bias[:, None, None, :]


def _proj_from_dirs(out_f, out_b, wih_t_f, wih_t_b, bias_f, bias_b, H):
    """Layer>0 projection fed from (out_f, out_b) directly (no concat)."""
    wf = jnp.stack([wih_t_f[:H], wih_t_b[:H]], axis=0).astype(jnp.bfloat16)  # (2,H,4H)
    wb = jnp.stack([wih_t_f[H:], wih_t_b[H:]], axis=0).astype(jnp.bfloat16)  # (2,H,4H)
    bias = jnp.stack([bias_f, bias_b], axis=0)                               # (2, 4H)
    xp = (jnp.einsum('tbh,khg->ktbg', out_f, wf,
                     preferred_element_type=jnp.float32)
          + jnp.einsum('tbh,khg->ktbg', out_b, wb,
                       preferred_element_type=jnp.float32))
    return xp + bias[:, None, None, :]


def _bidir_layer(xp_f, xp_b, whh_f_t, whh_b_t, hidden_dim, time_block,
                 vmem_limit):
    """One bidirectional layer. xp_*: (T, Bp, 4H) bf16 -> (out_f, out_b) bf16."""
    T, Bp, _ = xp_f.shape
    H = hidden_dim
    TT = time_block
    nb = (T + TT - 1) // TT
    Tp = nb * TT
    P = Tp - T
    if P:
        # forward: pad tail; backward: pad head, so the backward recurrence
        # starts with zero state exactly at the true last timestep.
        xp_f = jnp.pad(xp_f, ((0, P), (0, 0), (0, 0)))
        xp_b = jnp.pad(xp_b, ((P, 0), (0, 0), (0, 0)))

    unroll = TT if TT <= 16 else 8
    kernel = functools.partial(_bilstm_layer_kernel,
                               hidden_dim=H, time_block=TT, unroll=unroll)

    out_f, out_b = pl.pallas_call(
        kernel,
        out_shape=(jax.ShapeDtypeStruct((Tp, Bp, H), jnp.bfloat16),
                   jax.ShapeDtypeStruct((Tp, Bp, H), jnp.bfloat16)),
        grid_spec=pltpu.PrefetchScalarGridSpec(
            num_scalar_prefetch=0,
            grid=(nb,),
            in_specs=[
                # forward-time projection slab (bf16)
                pl.BlockSpec((TT, Bp, 4 * H), lambda i: (i, 0, 0)),
                # backward-time projection slab: mirrored via index_map
                pl.BlockSpec((TT, Bp, 4 * H), lambda i: (nb - 1 - i, 0, 0)),
                # recurrent weights (constant index -> resident)
                pl.BlockSpec((H, 4 * H), lambda i: (0, 0)),
                pl.BlockSpec((H, 4 * H), lambda i: (0, 0)),
            ],
            out_specs=[
                pl.BlockSpec((TT, Bp, H), lambda i: (i, 0, 0)),
                pl.BlockSpec((TT, Bp, H), lambda i: (nb - 1 - i, 0, 0)),
            ],
            scratch_shapes=[
                pltpu.VMEM((Bp, H), jnp.float32),   # h fwd
                pltpu.VMEM((Bp, H), jnp.float32),   # c fwd
                pltpu.VMEM((Bp, H), jnp.float32),   # h bwd
                pltpu.VMEM((Bp, H), jnp.float32),   # c bwd
            ],
        ),
        compiler_params=pltpu.CompilerParams(
            dimension_semantics=("arbitrary",),      # sequential recurrence
            vmem_limit_bytes=int(vmem_limit)),
    )(xp_f, xp_b, whh_f_t, whh_b_t)

    if P:
        out_f = out_f[:T]
        out_b = out_b[P:]
    return out_f, out_b


def bilstm_encoder(x_btd, params, hidden_dim, num_layers):
    """x_btd: (B, T, input_dim) -> (B, T, 2*hidden_dim), float32."""
    B, T, _ = x_btd.shape
    H = hidden_dim
    # batch_first -> time-major; pad batch to a multiple of 16 (bf16 packing).
    x = jnp.transpose(x_btd, (1, 0, 2)).astype(jnp.float32)   # (T, B, D)
    Bp = ((B + 15) // 16) * 16
    if Bp != B:
        x = jnp.pad(x, ((0, 0), (0, Bp - B), (0, 0)))

    vmem_limit = _vmem_limit_bytes()
    TT = _pick_time_block(T, Bp, H, vmem_limit)

    out_f = out_b = None
    for layer in range(num_layers):
        wih_f, whh_f, bias_f = _prep_dir_params(params[(layer, 0)], H)
        wih_b, whh_b, bias_b = _prep_dir_params(params[(layer, 1)], H)
        if layer == 0:
            xp_all = _proj_from_x(x, wih_f, wih_b, bias_f, bias_b)
        else:
            xp_all = _proj_from_dirs(out_f, out_b, wih_f, wih_b,
                                     bias_f, bias_b, H)
        xp_fwd = xp_all[0].astype(jnp.bfloat16)
        xp_bwd = xp_all[1].astype(jnp.bfloat16)
        out_f, out_b = _bidir_layer(xp_fwd, xp_bwd, whh_f, whh_b,
                                    H, TT, vmem_limit)

    # single concat at the API boundary only
    out = jnp.concatenate([out_f.astype(jnp.float32),
                           out_b.astype(jnp.float32)], axis=-1)   # (T, Bp, 2H)
    return jnp.transpose(out, (1, 0, 2))[:B]                       # (B, T, 2H)


# ----------------------------------------------------------------------------
# Deterministic parameter construction (mirrors nn.LSTM parameter shapes).
# ----------------------------------------------------------------------------
def init_params(key, input_dim, hidden_dim, num_layers):
    params = {}
    k = 1.0 / jnp.sqrt(hidden_dim)
    for layer in range(num_layers):
        in_size = input_dim if layer == 0 else 2 * hidden_dim
        for direction in range(2):  # 0 = forward, 1 = reverse
            key, k1, k2, k3, k4 = jax.random.split(key, 5)
            w_ih = jax.random.uniform(k1, (4 * hidden_dim, in_size),
                                      jnp.float32, -k, k)
            w_hh = jax.random.uniform(k2, (4 * hidden_dim, hidden_dim),
                                      jnp.float32, -k, k)
            b_ih = jax.random.uniform(k3, (4 * hidden_dim,), jnp.float32, -k, k)
            b_hh = jax.random.uniform(k4, (4 * hidden_dim,), jnp.float32, -k, k)
            params[(layer, direction)] = (w_ih, w_hh, b_ih, b_hh)
    return params


if __name__ == "__main__":
    # Small shapes consistent with the module's forward: x is (B, T, input_dim).
    B, T, INPUT_DIM, HIDDEN_DIM, NUM_LAYERS = 2, 8, 32, 32, 2

    root = jax.random.PRNGKey(0)
    kx, kp = jax.random.split(root)
    x = jax.random.normal(kx, (B, T, INPUT_DIM), dtype=jnp.float32)
    params = init_params(kp, INPUT_DIM, HIDDEN_DIM, NUM_LAYERS)

    fn = jax.jit(functools.partial(bilstm_encoder,
                                   hidden_dim=HIDDEN_DIM,
                                   num_layers=NUM_LAYERS))
    out = jax.block_until_ready(fn(x, params))

    assert out.shape == (B, T, 2 * HIDDEN_DIM), out.shape
    assert out.dtype == jnp.float32
    assert bool(jnp.all(jnp.isfinite(out)))
    print("KERNEL_OK")
</pallas_src>

<mosaic_0001>
module attributes {stable_mosaic.version = 11 : i64} {
  func.func @_bilstm_layer_kernel(%arg0: i32, %arg1: memref<8x16x128xbf16, #tpu.memory_space<vmem>>, %arg2: memref<8x16x128xbf16, #tpu.memory_space<vmem>>, %arg3: memref<32x128xbf16, #tpu.memory_space<vmem>>, %arg4: memref<32x128xbf16, #tpu.memory_space<vmem>>, %arg5: memref<8x16x32xbf16, #tpu.memory_space<vmem>>, %arg6: memref<8x16x32xbf16, #tpu.memory_space<vmem>>, %arg7: memref<16x32xf32, #tpu.memory_space<vmem>>, %arg8: memref<16x32xf32, #tpu.memory_space<vmem>>, %arg9: memref<16x32xf32, #tpu.memory_space<vmem>>, %arg10: memref<16x32xf32, #tpu.memory_space<vmem>>) attributes {dimension_semantics = [#tpu.dimension_semantics<arbitrary>], iteration_bounds = array<i64: 1>, scalar_prefetch = 0 : i64, scratch_operands = 4 : i64, tpu.core_type = #tpu.core_type<tc>, window_params = [{transform_indices = @transform_0, window_bounds = array<i64: 8, 16, 128>}, {transform_indices = @transform_1, window_bounds = array<i64: 8, 16, 128>}, {pipeline_mode = #tpu.pipeline_mode<synchronous>, transform_indices = @transform_2, window_bounds = array<i64: 32, 128>}, {pipeline_mode = #tpu.pipeline_mode<synchronous>, transform_indices = @transform_3, window_bounds = array<i64: 32, 128>}, {transform_indices = @transform_4, window_bounds = array<i64: 8, 16, 32>}, {transform_indices = @transform_5, window_bounds = array<i64: 8, 16, 32>}]} {
    %c0_i32 = arith.constant 0 : i32
    %0 = arith.cmpi eq, %arg0, %c0_i32 : i32
    %1 = arith.extui %0 : i1 to i32
    %c0_i32_0 = arith.constant 0 : i32
    %2 = arith.cmpi ne, %1, %c0_i32_0 : i32
    scf.if %2 {
      %cst_152 = arith.constant 0.000000e+00 : f32
      %483 = vector.broadcast %cst_152 : f32 to vector<16x32xf32>
      %c0_153 = arith.constant 0 : index
      %c0_154 = arith.constant 0 : index
      %484 = vector.load %arg7[%c0_153, %c0_154] : memref<16x32xf32, #tpu.memory_space<vmem>>, vector<16x32xf32>
      tpu.vector_store %arg7[%c0_153, %c0_154], %483 {strides = array<i32>} : memref<16x32xf32, #tpu.memory_space<vmem>>, vector<16x32xf32>,
      %cst_155 = arith.constant 0.000000e+00 : f32
      %485 = vector.broadcast %cst_155 : f32 to vector<16x32xf32>
      %c0_156 = arith.constant 0 : index
      %c0_157 = arith.constant 0 : index
      %486 = vector.load %arg8[%c0_156, %c0_157] : memref<16x32xf32, #tpu.memory_space<vmem>>, vector<16x32xf32>
      tpu.vector_store %arg8[%c0_156, %c0_157], %485 {strides = array<i32>} : memref<16x32xf32, #tpu.memory_space<vmem>>, vector<16x32xf32>,
      %cst_158 = arith.constant 0.000000e+00 : f32
      %487 = vector.broadcast %cst_158 : f32 to vector<16x32xf32>
      %c0_159 = arith.constant 0 : index
      %c0_160 = arith.constant 0 : index
      %488 = vector.load %arg9[%c0_159, %c0_160] : memref<16x32xf32, #tpu.memory_space<vmem>>, vector<16x32xf32>
      tpu.vector_store %arg9[%c0_159, %c0_160], %487 {strides = array<i32>} : memref<16x32xf32, #tpu.memory_space<vmem>>, vector<16x32xf32>,
      %cst_161 = arith.constant 0.000000e+00 : f32
      %489 = vector.broadcast %cst_161 : f32 to vector<16x32xf32>
      %c0_162 = arith.constant 0 : index
      %c0_163 = arith.constant 0 : index
      %490 = vector.load %arg10[%c0_162, %c0_163] : memref<16x32xf32, #tpu.memory_space<vmem>>, vector<16x32xf32>
      tpu.vector_store %arg10[%c0_162, %c0_163], %489 {strides = array<i32>} : memref<16x32xf32, #tpu.memory_space<vmem>>, vector<16x32xf32>,
    } else {
    }
    %c0 = arith.constant 0 : index
    %c0_1 = arith.constant 0 : index
    %3 = vector.load %arg7[%c0, %c0_1] : memref<16x32xf32, #tpu.memory_space<vmem>>, vector<16x32xf32>
    %c0_2 = arith.constant 0 : index
    %c0_3 = arith.constant 0 : index
    %4 = vector.load %arg8[%c0_2, %c0_3] : memref<16x32xf32, #tpu.memory_space<vmem>>, vector<16x32xf32>
    %c0_4 = arith.constant 0 : index
    %c0_5 = arith.constant 0 : index
    %5 = vector.load %arg9[%c0_4, %c0_5] : memref<16x32xf32, #tpu.memory_space<vmem>>, vector<16x32xf32>
    %c0_6 = arith.constant 0 : index
    %c0_7 = arith.constant 0 : index
    %6 = vector.load %arg10[%c0_6, %c0_7] : memref<16x32xf32, #tpu.memory_space<vmem>>, vector<16x32xf32>
    %c0_i32_8 = arith.constant 0 : i32
    %7 = arith.index_cast %c0_i32_8 : i32 to index
    %c0_9 = arith.constant 0 : index
    %c0_10 = arith.constant 0 : index
    %8 = vector.load %arg1[%7, %c0_9, %c0_10] : memref<8x16x128xbf16, #tpu.memory_space<vmem>>, vector<1x16x128xbf16>
    %9 = vector.shape_cast %8 : vector<1x16x128xbf16> to vector<16x128xbf16>
    %10 = arith.truncf %3 : vector<16x32xf32> to vector<16x32xbf16>
    %c0_11 = arith.constant 0 : index
    %c0_12 = arith.constant 0 : index
    %11 = vector.load %arg3[%c0_11, %c0_12] : memref<32x128xbf16, #tpu.memory_space<vmem>>, vector<32x128xbf16>
    %cst = arith.constant dense<0.000000e+00> : vector<16x128xf32>
    %12 = tpu.matmul %10, %11, %cst {dimension_numbers = #tpu.dot_dimension_numbers<[1], [0], [0], [1], [0, 0, 1, 1], [], []>} : vector<16x32xbf16>, vector<32x128xbf16>, vector<16x128xf32> -> vector<16x128xf32>
    %13 = arith.extf %9 : vector<16x128xbf16> to vector<16x128xf32>
    %14 = arith.addf %12, %13 : vector<16x128xf32>
    %15 = vector.extract_strided_slice %14 {offsets = [0, 0], sizes = [16, 96], strides = [1, 1]} : vector<16x128xf32> to vector<16x96xf32>
    %16 = arith.negf %15 : vector<16x96xf32>
    %17 = math.exp %16 : vector<16x96xf32>
    %cst_13 = arith.constant 1.000000e+00 : f32
    %18 = vector.broadcast %cst_13 : f32 to vector<16x96xf32>
    %19 = arith.addf %18, %17 : vector<16x96xf32>
    %20 = arith.divf %18, %19 : vector<16x96xf32>
    %21 = vector.extract_strided_slice %20 {offsets = [0, 0], sizes = [16, 32], strides = [1, 1]} : vector<16x96xf32> to vector<16x32xf32>
    %22 = vector.extract_strided_slice %20 {offsets = [0, 32], sizes = [16, 32], strides = [1, 1]} : vector<16x96xf32> to vector<16x32xf32>
    %23 = vector.extract_strided_slice %20 {offsets = [0, 64], sizes = [16, 32], strides = [1, 1]} : vector<16x96xf32> to vector<16x32xf32>
    %24 = vector.extract_strided_slice %14 {offsets = [0, 96], sizes = [16, 32], strides = [1, 1]} : vector<16x128xf32> to vector<16x32xf32>
    %25 = math.tanh %24 : vector<16x32xf32>
    %26 = arith.mulf %22, %4 : vector<16x32xf32>
    %27 = arith.mulf %21, %25 : vector<16x32xf32>
    %28 = arith.addf %26, %27 : vector<16x32xf32>
    %29 = math.tanh %28 : vector<16x32xf32>
    %30 = arith.mulf %23, %29 : vector<16x32xf32>
    %31 = arith.truncf %30 : vector<16x32xf32> to vector<16x32xbf16>
    %32 = arith.index_cast %c0_i32_8 : i32 to index
    %c0_14 = arith.constant 0 : index
    %c0_15 = arith.constant 0 : index
    %33 = vector.load %arg5[%32, %c0_14, %c0_15] : memref<8x16x32xbf16, #tpu.memory_space<vmem>>, vector<1x16x32xbf16>
    %34 = vector.shape_cast %33 : vector<1x16x32xbf16> to vector<16x32xbf16>
    %35 = vector.shape_cast %31 : vector<16x32xbf16> to vector<1x16x32xbf16>
    tpu.vector_store %arg5[%32, %c0_14, %c0_15], %35 {strides = array<i32>} : memref<8x16x32xbf16, #tpu.memory_space<vmem>>, vector<1x16x32xbf16>,
    %c7_i32 = arith.constant 7 : i32
    %36 = arith.subi %c7_i32, %c0_i32_8 : i32
    %37 = arith.index_cast %36 : i32 to index
    %c0_16 = arith.constant 0 : index
    %c0_17 = arith.constant 0 : index
    %38 = vector.load %arg2[%37, %c0_16, %c0_17] : memref<8x16x128xbf16, #tpu.memory_space<vmem>>, vector<1x16x128xbf16>
    %39 = vector.shape_cast %38 : vector<1x16x128xbf16> to vector<16x128xbf16>
    %40 = arith.truncf %5 : vector<16x32xf32> to vector<16x32xbf16>
    %c0_18 = arith.constant 0 : index
    %c0_19 = arith.constant 0 : index
    %41 = vector.load %arg4[%c0_18, %c0_19] : memref<32x128xbf16, #tpu.memory_space<vmem>>, vector<32x128xbf16>
    %cst_20 = arith.constant dense<0.000000e+00> : vector<16x128xf32>
    %42 = tpu.matmul %40, %41, %cst_20 {dimension_numbers = #tpu.dot_dimension_numbers<[1], [0], [0], [1], [0, 0, 1, 1], [], []>} : vector<16x32xbf16>, vector<32x128xbf16>, vector<16x128xf32> -> vector<16x128xf32>
    %43 = arith.extf %39 : vector<16x128xbf16> to vector<16x128xf32>
    %44 = arith.addf %42, %43 : vector<16x128xf32>
    %45 = vector.extract_strided_slice %44 {offsets = [0, 0], sizes = [16, 96], strides = [1, 1]} : vector<16x128xf32> to vector<16x96xf32>
    %46 = arith.negf %45 : vector<16x96xf32>
    %47 = math.exp %46 : vector<16x96xf32>
    %cst_21 = arith.constant 1.000000e+00 : f32
    %48 = vector.broadcast %cst_21 : f32 to vector<16x96xf32>
    %49 = arith.addf %48, %47 : vector<16x96xf32>
    %50 = arith.divf %48, %49 : vector<16x96xf32>
    %51 = vector.extract_strided_slice %50 {offsets = [0, 0], sizes = [16, 32], strides = [1, 1]} : vector<16x96xf32> to vector<16x32xf32>
    %52 = vector.extract_strided_slice %50 {offsets = [0, 32], sizes = [16, 32], strides = [1, 1]} : vector<16x96xf32> to vector<16x32xf32>
    %53 = vector.extract_strided_slice %50 {offsets = [0, 64], sizes = [16, 32], strides = [1, 1]} : vector<16x96xf32> to vector<16x32xf32>
    %54 = vector.extract_strided_slice %44 {offsets = [0, 96], sizes = [16, 32], strides = [1, 1]} : vector<16x128xf32> to vector<16x32xf32>
    %55 = math.tanh %54 : vector<16x32xf32>
    %56 = arith.mulf %52, %6 : vector<16x32xf32>
    %57 = arith.mulf %51, %55 : vector<16x32xf32>
    %58 = arith.addf %56, %57 : vector<16x32xf32>
    %59 = math.tanh %58 : vector<16x32xf32>
    %60 = arith.mulf %53, %59 : vector<16x32xf32>
    %61 = arith.truncf %60 : vector<16x32xf32> to vector<16x32xbf16>
    %62 = arith.index_cast %36 : i32 to index
    %c0_22 = arith.constant 0 : index
    %c0_23 = arith.constant 0 : index
    %63 = vector.load %arg6[%62, %c0_22, %c0_23] : memref<8x16x32xbf16, #tpu.memory_space<vmem>>, vector<1x16x32xbf16>
    %64 = vector.shape_cast %63 : vector<1x16x32xbf16> to vector<16x32xbf16>
    %65 = vector.shape_cast %61 : vector<16x32xbf16> to vector<1x16x32xbf16>
    tpu.vector_store %arg6[%62, %c0_22, %c0_23], %65 {strides = array<i32>} : memref<8x16x32xbf16, #tpu.memory_space<vmem>>, vector<1x16x32xbf16>,
    %c1_i32 = arith.constant 1 : i32
    %66 = arith.index_cast %c1_i32 : i32 to index
    %c0_24 = arith.constant 0 : index
    %c0_25 = arith.constant 0 : index
    %67 = vector.load %arg1[%66, %c0_24, %c0_25] : memref<8x16x128xbf16, #tpu.memory_space<vmem>>, vector<1x16x128xbf16>
    %68 = vector.shape_cast %67 : vector<1x16x128xbf16> to vector<16x128xbf16>
    %69 = arith.truncf %30 : vector<16x32xf32> to vector<16x32xbf16>
    %c0_26 = arith.constant 0 : index
    %c0_27 = arith.constant 0 : index
    %70 = vector.load %arg3[%c0_26, %c0_27] : memref<32x128xbf16, #tpu.memory_space<vmem>>, vector<32x128xbf16>
    %cst_28 = arith.constant dense<0.000000e+00> : vector<16x128xf32>
    %71 = tpu.matmul %69, %70, %cst_28 {dimension_numbers = #tpu.dot_dimension_numbers<[1], [0], [0], [1], [0, 0, 1, 1], [], []>} : vector<16x32xbf16>, vector<32x128xbf16>, vector<16x128xf32> -> vector<16x128xf32>
    %72 = arith.extf %68 : vector<16x128xbf16> to vector<16x128xf32>
    %73 = arith.addf %71, %72 : vector<16x128xf32>
    %74 = vector.extract_strided_slice %73 {offsets = [0, 0], sizes = [16, 96], strides = [1, 1]} : vector<16x128xf32> to vector<16x96xf32>
    %75 = arith.negf %74 : vector<16x96xf32>
    %76 = math.exp %75 : vector<16x96xf32>
    %cst_29 = arith.constant 1.000000e+00 : f32
    %77 = vector.broadcast %cst_29 : f32 to vector<16x96xf32>
    %78 = arith.addf %77, %76 : vector<16x96xf32>
    %79 = arith.divf %77, %78 : vector<16x96xf32>
    %80 = vector.extract_strided_slice %79 {offsets = [0, 0], sizes = [16, 32], strides = [1, 1]} : vector<16x96xf32> to vector<16x32xf32>
    %81 = vector.extract_strided_slice %79 {offsets = [0, 32], sizes = [16, 32], strides = [1, 1]} : vector<16x96xf32> to vector<16x32xf32>
    %82 = vector.extract_strided_slice %79 {offsets = [0, 64], sizes = [16, 32], strides = [1, 1]} : vector<16x96xf32> to vector<16x32xf32>
    %83 = vector.extract_strided_slice %73 {offsets = [0, 96], sizes = [16, 32], strides = [1, 1]} : vector<16x128xf32> to vector<16x32xf32>
    %84 = math.tanh %83 : vector<16x32xf32>
    %85 = arith.mulf %81, %28 : vector<16x32xf32>
    %86 = arith.mulf %80, %84 : vector<16x32xf32>
    %87 = arith.addf %85, %86 : vector<16x32xf32>
    %88 = math.tanh %87 : vector<16x32xf32>
    %89 = arith.mulf %82, %88 : vector<16x32xf32>
    %90 = arith.truncf %89 : vector<16x32xf32> to vector<16x32xbf16>
    %91 = arith.index_cast %c1_i32 : i32 to index
    %c0_30 = arith.constant 0 : index
    %c0_31 = arith.constant 0 : index
    %92 = vector.load %arg5[%91, %c0_30, %c0_31] : memref<8x16x32xbf16, #tpu.memory_space<vmem>>, vector<1x16x32xbf16>
    %93 = vector.shape_cast %92 : vector<1x16x32xbf16> to vector<16x32xbf16>
    %94 = vector.shape_cast %90 : vector<16x32xbf16> to vector<1x16x32xbf16>
    tpu.vector_store %arg5[%91, %c0_30, %c0_31], %94 {strides = array<i32>} : memref<8x16x32xbf16, #tpu.memory_space<vmem>>, vector<1x16x32xbf16>,
    %c7_i32_32 = arith.constant 7 : i32
    %95 = arith.subi %c7_i32_32, %c1_i32 : i32
    %96 = arith.index_cast %95 : i32 to index
    %c0_33 = arith.constant 0 : index
    %c0_34 = arith.constant 0 : index
    %97 = vector.load %arg2[%96, %c0_33, %c0_34] : memref<8x16x128xbf16, #tpu.memory_space<vmem>>, vector<1x16x128xbf16>
    %98 = vector.shape_cast %97 : vector<1x16x128xbf16> to vector<16x128xbf16>
    %99 = arith.truncf %60 : vector<16x32xf32> to vector<16x32xbf16>
    %c0_35 = arith.constant 0 : index
    %c0_36 = arith.constant 0 : index
    %100 = vector.load %arg4[%c0_35, %c0_36] : memref<32x128xbf16, #tpu.memory_space<vmem>>, vector<32x128xbf16>
    %cst_37 = arith.constant dense<0.000000e+00> : vector<16x128xf32>
    %101 = tpu.matmul %99, %100, %cst_37 {dimension_numbers = #tpu.dot_dimension_numbers<[1], [0], [0], [1], [0, 0, 1, 1], [], []>} : vector<16x32xbf16>, vector<32x128xbf16>, vector<16x128xf32> -> vector<16x128xf32>
    %102 = arith.extf %98 : vector<16x128xbf16> to vector<16x128xf32>
    %103 = arith.addf %101, %102 : vector<16x128xf32>
    %104 = vector.extract_strided_slice %103 {offsets = [0, 0], sizes = [16, 96], strides = [1, 1]} : vector<16x128xf32> to vector<16x96xf32>
    %105 = arith.negf %104 : vector<16x96xf32>
    %106 = math.exp %105 : vector<16x96xf32>
    %cst_38 = arith.constant 1.000000e+00 : f32
    %107 = vector.broadcast %cst_38 : f32 to vector<16x96xf32>
    %108 = arith.addf %107, %106 : vector<16x96xf32>
    %109 = arith.divf %107, %108 : vector<16x96xf32>
    %110 = vector.extract_strided_slice %109 {offsets = [0, 0], sizes = [16, 32], strides = [1, 1]} : vector<16x96xf32> to vector<16x32xf32>
    %111 = vector.extract_strided_slice %109 {offsets = [0, 32], sizes = [16, 32], strides = [1, 1]} : vector<16x96xf32> to vector<16x32xf32>
    %112 = vector.extract_strided_slice %109 {offsets = [0, 64], sizes = [16, 32], strides = [1, 1]} : vector<16x96xf32> to vector<16x32xf32>
    %113 = vector.extract_strided_slice %103 {offsets = [0, 96], sizes = [16, 32], strides = [1, 1]} : vector<16x128xf32> to vector<16x32xf32>
    %114 = math.tanh %113 : vector<16x32xf32>
    %115 = arith.mulf %111, %58 : vector<16x32xf32>
    %116 = arith.mulf %110, %114 : vector<16x32xf32>
    %117 = arith.addf %115, %116 : vector<16x32xf32>
    %118 = math.tanh %117 : vector<16x32xf32>
    %119 = arith.mulf %112, %118 : vector<16x32xf32>
    %120 = arith.truncf %119 : vector<16x32xf32> to vector<16x32xbf16>
    %121 = arith.index_cast %95 : i32 to index
    %c0_39 = arith.constant 0 : index
    %c0_40 = arith.constant 0 : index
    %122 = vector.load %arg6[%121, %c0_39, %c0_40] : memref<8x16x32xbf16, #tpu.memory_space<vmem>>, vector<1x16x32xbf16>
    %123 = vector.shape_cast %122 : vector<1x16x32xbf16> to vector<16x32xbf16>
    %124 = vector.shape_cast %120 : vector<16x32xbf16> to vector<1x16x32xbf16>
    tpu.vector_store %arg6[%121, %c0_39, %c0_40], %124 {strides = array<i32>} : memref<8x16x32xbf16, #tpu.memory_space<vmem>>, vector<1x16x32xbf16>,
    %c2_i32 = arith.constant 2 : i32
    %125 = arith.index_cast %c2_i32 : i32 to index
    %c0_41 = arith.constant 0 : index
    %c0_42 = arith.constant 0 : index
    %126 = vector.load %arg1[%125, %c0_41, %c0_42] : memref<8x16x128xbf16, #tpu.memory_space<vmem>>, vector<1x16x128xbf16>
    %127 = vector.shape_cast %126 : vector<1x16x128xbf16> to vector<16x128xbf16>
    %128 = arith.truncf %89 : vector<16x32xf32> to vector<16x32xbf16>
    %c0_43 = arith.constant 0 : index
    %c0_44 = arith.constant 0 : index
    %129 = vector.load %arg3[%c0_43, %c0_44] : memref<32x128xbf16, #tpu.memory_space<vmem>>, vector<32x128xbf16>
    %cst_45 = arith.constant dense<0.000000e+00> : vector<16x128xf32>
    %130 = tpu.matmul %128, %129, %cst_45 {dimension_numbers = #tpu.dot_dimension_numbers<[1], [0], [0], [1], [0, 0, 1, 1], [], []>} : vector<16x32xbf16>, vector<32x128xbf16>, vector<16x128xf32> -> vector<16x128xf32>
    %131 = arith.extf %127 : vector<16x128xbf16> to vector<16x128xf32>
    %132 = arith.addf %130, %131 : vector<16x128xf32>
    %133 = vector.extract_strided_slice %132 {offsets = [0, 0], sizes = [16, 96], strides = [1, 1]} : vector<16x128xf32> to vector<16x96xf32>
    %134 = arith.negf %133 : vector<16x96xf32>
    %135 = math.exp %134 : vector<16x96xf32>
    %cst_46 = arith.constant 1.000000e+00 : f32
    %136 = vector.broadcast %cst_46 : f32 to vector<16x96xf32>
    %137 = arith.addf %136, %135 : vector<16x96xf32>
    %138 = arith.divf %136, %137 : vector<16x96xf32>
    %139 = vector.extract_strided_slice %138 {offsets = [0, 0], sizes = [16, 32], strides = [1, 1]} : vector<16x96xf32> to vector<16x32xf32>
    %140 = vector.extract_strided_slice %138 {offsets = [0, 32], sizes = [16, 32], strides = [1, 1]} : vector<16x96xf32> to vector<16x32xf32>
    %141 = vector.extract_strided_slice %138 {offsets = [0, 64], sizes = [16, 32], strides = [1, 1]} : vector<16x96xf32> to vector<16x32xf32>
    %142 = vector.extract_strided_slice %132 {offsets = [0, 96], sizes = [16, 32], strides = [1, 1]} : vector<16x128xf32> to vector<16x32xf32>
    %143 = math.tanh %142 : vector<16x32xf32>
    %144 = arith.mulf %140, %87 : vector<16x32xf32>
    %145 = arith.mulf %139, %143 : vector<16x32xf32>
    %146 = arith.addf %144, %145 : vector<16x32xf32>
    %147 = math.tanh %146 : vector<16x32xf32>
    %148 = arith.mulf %141, %147 : vector<16x32xf32>
    %149 = arith.truncf %148 : vector<16x32xf32> to vector<16x32xbf16>
    %150 = arith.index_cast %c2_i32 : i32 to index
    %c0_47 = arith.constant 0 : index
    %c0_48 = arith.constant 0 : index
    %151 = vector.load %arg5[%150, %c0_47, %c0_48] : memref<8x16x32xbf16, #tpu.memory_space<vmem>>, vector<1x16x32xbf16>
    %152 = vector.shape_cast %151 : vector<1x16x32xbf16> to vector<16x32xbf16>
    %153 = vector.shape_cast %149 : vector<16x32xbf16> to vector<1x16x32xbf16>
    tpu.vector_store %arg5[%150, %c0_47, %c0_48], %153 {strides = array<i32>} : memref<8x16x32xbf16, #tpu.memory_space<vmem>>, vector<1x16x32xbf16>,
    %c7_i32_49 = arith.constant 7 : i32
    %154 = arith.subi %c7_i32_49, %c2_i32 : i32
    %155 = arith.index_cast %154 : i32 to index
    %c0_50 = arith.constant 0 : index
    %c0_51 = arith.constant 0 : index
    %156 = vector.load %arg2[%155, %c0_50, %c0_51] : memref<8x16x128xbf16, #tpu.memory_space<vmem>>, vector<1x16x128xbf16>
    %157 = vector.shape_cast %156 : vector<1x16x128xbf16> to vector<16x128xbf16>
    %158 = arith.truncf %119 : vector<16x32xf32> to vector<16x32xbf16>
    %c0_52 = arith.constant 0 : index
    %c0_53 = arith.constant 0 : index
    %159 = vector.load %arg4[%c0_52, %c0_53] : memref<32x128xbf16, #tpu.memory_space<vmem>>, vector<32x128xbf16>
    %cst_54 = arith.constant dense<0.000000e+00> : vector<16x128xf32>
    %160 = tpu.matmul %158, %159, %cst_54 {dimension_numbers = #tpu.dot_dimension_numbers<[1], [0], [0], [1], [0, 0, 1, 1], [], []>} : vector<16x32xbf16>, vector<32x128xbf16>, vector<16x128xf32> -> vector<16x128xf32>
    %161 = arith.extf %157 : vector<16x128xbf16> to vector<16x128xf32>
    %162 = arith.addf %160, %161 : vector<16x128xf32>
    %163 = vector.extract_strided_slice %162 {offsets = [0, 0], sizes = [16, 96], strides = [1, 1]} : vector<16x128xf32> to vector<16x96xf32>
    %164 = arith.negf %163 : vector<16x96xf32>
    %165 = math.exp %164 : vector<16x96xf32>
    %cst_55 = arith.constant 1.000000e+00 : f32
    %166 = vector.broadcast %cst_55 : f32 to vector<16x96xf32>
    %167 = arith.addf %166, %165 : vector<16x96xf32>
    %168 = arith.divf %166, %167 : vector<16x96xf32>
    %169 = vector.extract_strided_slice %168 {offsets = [0, 0], sizes = [16, 32], strides = [1, 1]} : vector<16x96xf32> to vector<16x32xf32>
    %170 = vector.extract_strided_slice %168 {offsets = [0, 32], sizes = [16, 32], strides = [1, 1]} : vector<16x96xf32> to vector<16x32xf32>
    %171 = vector.extract_strided_slice %168 {offsets = [0, 64], sizes = [16, 32], strides = [1, 1]} : vector<16x96xf32> to vector<16x32xf32>
    %172 = vector.extract_strided_slice %162 {offsets = [0, 96], sizes = [16, 32], strides = [1, 1]} : vector<16x128xf32> to vector<16x32xf32>
    %173 = math.tanh %172 : vector<16x32xf32>
    %174 = arith.mulf %170, %117 : vector<16x32xf32>
    %175 = arith.mulf %169, %173 : vector<16x32xf32>
    %176 = arith.addf %174, %175 : vector<16x32xf32>
    %177 = math.tanh %176 : vector<16x32xf32>
    %178 = arith.mulf %171, %177 : vector<16x32xf32>
    %179 = arith.truncf %178 : vector<16x32xf32> to vector<16x32xbf16>
    %180 = arith.index_cast %154 : i32 to index
    %c0_56 = arith.constant 0 : index
    %c0_57 = arith.constant 0 : index
    %181 = vector.load %arg6[%180, %c0_56, %c0_57] : memref<8x16x32xbf16, #tpu.memory_space<vmem>>, vector<1x16x32xbf16>
    %182 = vector.shape_cast %181 : vector<1x16x32xbf16> to vector<16x32xbf16>
    %183 = vector.shape_cast %179 : vector<16x32xbf16> to vector<1x16x32xbf16>
    tpu.vector_store %arg6[%180, %c0_56, %c0_57], %183 {strides = array<i32>} : memref<8x16x32xbf16, #tpu.memory_space<vmem>>, vector<1x16x32xbf16>,
    %c3_i32 = arith.constant 3 : i32
    %184 = arith.index_cast %c3_i32 : i32 to index
    %c0_58 = arith.constant 0 : index
    %c0_59 = arith.constant 0 : index
    %185 = vector.load %arg1[%184, %c0_58, %c0_59] : memref<8x16x128xbf16, #tpu.memory_space<vmem>>, vector<1x16x128xbf16>
    %186 = vector.shape_cast %185 : vector<1x16x128xbf16> to vector<16x128xbf16>
    %187 = arith.truncf %148 : vector<16x32xf32> to vector<16x32xbf16>
    %c0_60 = arith.constant 0 : index
    %c0_61 = arith.constant 0 : index
    %188 = vector.load %arg3[%c0_60, %c0_61] : memref<32x128xbf16, #tpu.memory_space<vmem>>, vector<32x128xbf16>
    %cst_62 = arith.constant dense<0.000000e+00> : vector<16x128xf32>
    %189 = tpu.matmul %187, %188, %cst_62 {dimension_numbers = #tpu.dot_dimension_numbers<[1], [0], [0], [1], [0, 0, 1, 1], [], []>} : vector<16x32xbf16>, vector<32x128xbf16>, vector<16x128xf32> -> vector<16x128xf32>
    %190 = arith.extf %186 : vector<16x128xbf16> to vector<16x128xf32>
    %191 = arith.addf %189, %190 : vector<16x128xf32>
    %192 = vector.extract_strided_slice %191 {offsets = [0, 0], sizes = [16, 96], strides = [1, 1]} : vector<16x128xf32> to vector<16x96xf32>
    %193 = arith.negf %192 : vector<16x96xf32>
    %194 = math.exp %193 : vector<16x96xf32>
    %cst_63 = arith.constant 1.000000e+00 : f32
    %195 = vector.broadcast %cst_63 : f32 to vector<16x96xf32>
    %196 = arith.addf %195, %194 : vector<16x96xf32>
    %197 = arith.divf %195, %196 : vector<16x96xf32>
    %198 = vector.extract_strided_slice %197 {offsets = [0, 0], sizes = [16, 32], strides = [1, 1]} : vector<16x96xf32> to vector<16x32xf32>
    %199 = vector.extract_strided_slice %197 {offsets = [0, 32], sizes = [16, 32], strides = [1, 1]} : vector<16x96xf32> to vector<16x32xf32>
    %200 = vector.extract_strided_slice %197 {offsets = [0, 64], sizes = [16, 32], strides = [1, 1]} : vector<16x96xf32> to vector<16x32xf32>
    %201 = vector.extract_strided_slice %191 {offsets = [0, 96], sizes = [16, 32], strides = [1, 1]} : vector<16x128xf32> to vector<16x32xf32>
    %202 = math.tanh %201 : vector<16x32xf32>
    %203 = arith.mulf %199, %146 : vector<16x32xf32>
    %204 = arith.mulf %198, %202 : vector<16x32xf32>
    %205 = arith.addf %203, %204 : vector<16x32xf32>
    %206 = math.tanh %205 : vector<16x32xf32>
    %207 = arith.mulf %200, %206 : vector<16x32xf32>
    %208 = arith.truncf %207 : vector<16x32xf32> to vector<16x32xbf16>
    %209 = arith.index_cast %c3_i32 : i32 to index
    %c0_64 = arith.constant 0 : index
    %c0_65 = arith.constant 0 : index
    %210 = vector.load %arg5[%209, %c0_64, %c0_65] : memref<8x16x32xbf16, #tpu.memory_space<vmem>>, vector<1x16x32xbf16>
    %211 = vector.shape_cast %210 : vector<1x16x32xbf16> to vector<16x32xbf16>
    %212 = vector.shape_cast %208 : vector<16x32xbf16> to vector<1x16x32xbf16>
    tpu.vector_store %arg5[%209, %c0_64, %c0_65], %212 {strides = array<i32>} : memref<8x16x32xbf16, #tpu.memory_space<vmem>>, vector<1x16x32xbf16>,
    %c7_i32_66 = arith.constant 7 : i32
    %213 = arith.subi %c7_i32_66, %c3_i32 : i32
    %214 = arith.index_cast %213 : i32 to index
    %c0_67 = arith.constant 0 : index
    %c0_68 = arith.constant 0 : index
    %215 = vector.load %arg2[%214, %c0_67, %c0_68] : memref<8x16x128xbf16, #tpu.memory_space<vmem>>, vector<1x16x128xbf16>
    %216 = vector.shape_cast %215 : vector<1x16x128xbf16> to vector<16x128xbf16>
    %217 = arith.truncf %178 : vector<16x32xf32> to vector<16x32xbf16>
    %c0_69 = arith.constant 0 : index
    %c0_70 = arith.constant 0 : index
    %218 = vector.load %arg4[%c0_69, %c0_70] : memref<32x128xbf16, #tpu.memory_space<vmem>>, vector<32x128xbf16>
    %cst_71 = arith.constant dense<0.000000e+00> : vector<16x128xf32>
    %219 = tpu.matmul %217, %218, %cst_71 {dimension_numbers = #tpu.dot_dimension_numbers<[1], [0], [0], [1], [0, 0, 1, 1], [], []>} : vector<16x32xbf16>, vector<32x128xbf16>, vector<16x128xf32> -> vector<16x128xf32>
    %220 = arith.extf %216 : vector<16x128xbf16> to vector<16x128xf32>
    %221 = arith.addf %219, %220 : vector<16x128xf32>
    %222 = vector.extract_strided_slice %221 {offsets = [0, 0], sizes = [16, 96], strides = [1, 1]} : vector<16x128xf32> to vector<16x96xf32>
    %223 = arith.negf %222 : vector<16x96xf32>
    %224 = math.exp %223 : vector<16x96xf32>
    %cst_72 = arith.constant 1.000000e+00 : f32
    %225 = vector.broadcast %cst_72 : f32 to vector<16x96xf32>
    %226 = arith.addf %225, %224 : vector<16x96xf32>
    %227 = arith.divf %225, %226 : vector<16x96xf32>
    %228 = vector.extract_strided_slice %227 {offsets = [0, 0], sizes = [16, 32], strides = [1, 1]} : vector<16x96xf32> to vector<16x32xf32>
    %229 = vector.extract_strided_slice %227 {offsets = [0, 32], sizes = [16, 32], strides = [1, 1]} : vector<16x96xf32> to vector<16x32xf32>
    %230 = vector.extract_strided_slice %227 {offsets = [0, 64], sizes = [16, 32], strides = [1, 1]} : vector<16x96xf32> to vector<16x32xf32>
    %231 = vector.extract_strided_slice %221 {offsets = [0, 96], sizes = [16, 32], strides = [1, 1]} : vector<16x128xf32> to vector<16x32xf32>
    %232 = math.tanh %231 : vector<16x32xf32>
    %233 = arith.mulf %229, %176 : vector<16x32xf32>
    %234 = arith.mulf %228, %232 : vector<16x32xf32>
    %235 = arith.addf %233, %234 : vector<16x32xf32>
    %236 = math.tanh %235 : vector<16x32xf32>
    %237 = arith.mulf %230, %236 : vector<16x32xf32>
    %238 = arith.truncf %237 : vector<16x32xf32> to vector<16x32xbf16>
    %239 = arith.index_cast %213 : i32 to index
    %c0_73 = arith.constant 0 : index
    %c0_74 = arith.constant 0 : index
    %240 = vector.load %arg6[%239, %c0_73, %c0_74] : memref<8x16x32xbf16, #tpu.memory_space<vmem>>, vector<1x16x32xbf16>
    %241 = vector.shape_cast %240 : vector<1x16x32xbf16> to vector<16x32xbf16>
    %242 = vector.shape_cast %238 : vector<16x32xbf16> to vector<1x16x32xbf16>
    tpu.vector_store %arg6[%239, %c0_73, %c0_74], %242 {strides = array<i32>} : memref<8x16x32xbf16, #tpu.memory_space<vmem>>, vector<1x16x32xbf16>,
    %c4_i32 = arith.constant 4 : i32
    %243 = arith.index_cast %c4_i32 : i32 to index
    %c0_75 = arith.constant 0 : index
    %c0_76 = arith.constant 0 : index
    %244 = vector.load %arg1[%243, %c0_75, %c0_76] : memref<8x16x128xbf16, #tpu.memory_space<vmem>>, vector<1x16x128xbf16>
    %245 = vector.shape_cast %244 : vector<1x16x128xbf16> to vector<16x128xbf16>
    %246 = arith.truncf %207 : vector<16x32xf32> to vector<16x32xbf16>
    %c0_77 = arith.constant 0 : index
    %c0_78 = arith.constant 0 : index
    %247 = vector.load %arg3[%c0_77, %c0_78] : memref<32x128xbf16, #tpu.memory_space<vmem>>, vector<32x128xbf16>
    %cst_79 = arith.constant dense<0.000000e+00> : vector<16x128xf32>
    %248 = tpu.matmul %246, %247, %cst_79 {dimension_numbers = #tpu.dot_dimension_numbers<[1], [0], [0], [1], [0, 0, 1, 1], [], []>} : vector<16x32xbf16>, vector<32x128xbf16>, vector<16x128xf32> -> vector<16x128xf32>
    %249 = arith.extf %245 : vector<16x128xbf16> to vector<16x128xf32>
    %250 = arith.addf %248, %249 : vector<16x128xf32>
    %251 = vector.extract_strided_slice %250 {offsets = [0, 0], sizes = [16, 96], strides = [1, 1]} : vector<16x128xf32> to vector<16x96xf32>
    %252 = arith.negf %251 : vector<16x96xf32>
    %253 = math.exp %252 : vector<16x96xf32>
    %cst_80 = arith.constant 1.000000e+00 : f32
    %254 = vector.broadcast %cst_80 : f32 to vector<16x96xf32>
    %255 = arith.addf %254, %253 : vector<16x96xf32>
    %256 = arith.divf %254, %255 : vector<16x96xf32>
    %257 = vector.extract_strided_slice %256 {offsets = [0, 0], sizes = [16, 32], strides = [1, 1]} : vector<16x96xf32> to vector<16x32xf32>
    %258 = vector.extract_strided_slice %256 {offsets = [0, 32], sizes = [16, 32], strides = [1, 1]} : vector<16x96xf32> to vector<16x32xf32>
    %259 = vector.extract_strided_slice %256 {offsets = [0, 64], sizes = [16, 32], strides = [1, 1]} : vector<16x96xf32> to vector<16x32xf32>
    %260 = vector.extract_strided_slice %250 {offsets = [0, 96], sizes = [16, 32], strides = [1, 1]} : vector<16x128xf32> to vector<16x32xf32>
    %261 = math.tanh %260 : vector<16x32xf32>
    %262 = arith.mulf %258, %205 : vector<16x32xf32>
    %263 = arith.mulf %257, %261 : vector<16x32xf32>
    %264 = arith.addf %262, %263 : vector<16x32xf32>
    %265 = math.tanh %264 : vector<16x32xf32>
    %266 = arith.mulf %259, %265 : vector<16x32xf32>
    %267 = arith.truncf %266 : vector<16x32xf32> to vector<16x32xbf16>
    %268 = arith.index_cast %c4_i32 : i32 to index
    %c0_81 = arith.constant 0 : index
    %c0_82 = arith.constant 0 : index
    %269 = vector.load %arg5[%268, %c0_81, %c0_82] : memref<8x16x32xbf16, #tpu.memory_space<vmem>>, vector<1x16x32xbf16>
    %270 = vector.shape_cast %269 : vector<1x16x32xbf16> to vector<16x32xbf16>
    %271 = vector.shape_cast %267 : vector<16x32xbf16> to vector<1x16x32xbf16>
    tpu.vector_store %arg5[%268, %c0_81, %c0_82], %271 {strides = array<i32>} : memref<8x16x32xbf16, #tpu.memory_space<vmem>>, vector<1x16x32xbf16>,
    %c7_i32_83 = arith.constant 7 : i32
    %272 = arith.subi %c7_i32_83, %c4_i32 : i32
    %273 = arith.index_cast %272 : i32 to index
    %c0_84 = arith.constant 0 : index
    %c0_85 = arith.constant 0 : index
    %274 = vector.load %arg2[%273, %c0_84, %c0_85] : memref<8x16x128xbf16, #tpu.memory_space<vmem>>, vector<1x16x128xbf16>
    %275 = vector.shape_cast %274 : vector<1x16x128xbf16> to vector<16x128xbf16>
    %276 = arith.truncf %237 : vector<16x32xf32> to vector<16x32xbf16>
    %c0_86 = arith.constant 0 : index
    %c0_87 = arith.constant 0 : index
    %277 = vector.load %arg4[%c0_86, %c0_87] : memref<32x128xbf16, #tpu.memory_space<vmem>>, vector<32x128xbf16>
    %cst_88 = arith.constant dense<0.000000e+00> : vector<16x128xf32>
    %278 = tpu.matmul %276, %277, %cst_88 {dimension_numbers = #tpu.dot_dimension_numbers<[1], [0], [0], [1], [0, 0, 1, 1], [], []>} : vector<16x32xbf16>, vector<32x128xbf16>, vector<16x128xf32> -> vector<16x128xf32>
    %279 = arith.extf %275 : vector<16x128xbf16> to vector<16x128xf32>
    %280 = arith.addf %278, %279 : vector<16x128xf32>
    %281 = vector.extract_strided_slice %280 {offsets = [0, 0], sizes = [16, 96], strides = [1, 1]} : vector<16x128xf32> to vector<16x96xf32>
    %282 = arith.negf %281 : vector<16x96xf32>
    %283 = math.exp %282 : vector<16x96xf32>
    %cst_89 = arith.constant 1.000000e+00 : f32
    %284 = vector.broadcast %cst_89 : f32 to vector<16x96xf32>
    %285 = arith.addf %284, %283 : vector<16x96xf32>
    %286 = arith.divf %284, %285 : vector<16x96xf32>
    %287 = vector.extract_strided_slice %286 {offsets = [0, 0], sizes = [16, 32], strides = [1, 1]} : vector<16x96xf32> to vector<16x32xf32>
    %288 = vector.extract_strided_slice %286 {offsets = [0, 32], sizes = [16, 32], strides = [1, 1]} : vector<16x96xf32> to vector<16x32xf32>
    %289 = vector.extract_strided_slice %286 {offsets = [0, 64], sizes = [16, 32], strides = [1, 1]} : vector<16x96xf32> to vector<16x32xf32>
    %290 = vector.extract_strided_slice %280 {offsets = [0, 96], sizes = [16, 32], strides = [1, 1]} : vector<16x128xf32> to vector<16x32xf32>
    %291 = math.tanh %290 : vector<16x32xf32>
    %292 = arith.mulf %288, %235 : vector<16x32xf32>
    %293 = arith.mulf %287, %291 : vector<16x32xf32>
    %294 = arith.addf %292, %293 : vector<16x32xf32>
    %295 = math.tanh %294 : vector<16x32xf32>
    %296 = arith.mulf %289, %295 : vector<16x32xf32>
    %297 = arith.truncf %296 : vector<16x32xf32> to vector<16x32xbf16>
    %298 = arith.index_cast %272 : i32 to index
    %c0_90 = arith.constant 0 : index
    %c0_91 = arith.constant 0 : index
    %299 = vector.load %arg6[%298, %c0_90, %c0_91] : memref<8x16x32xbf16, #tpu.memory_space<vmem>>, vector<1x16x32xbf16>
    %300 = vector.shape_cast %299 : vector<1x16x32xbf16> to vector<16x32xbf16>
    %301 = vector.shape_cast %297 : vector<16x32xbf16> to vector<1x16x32xbf16>
    tpu.vector_store %arg6[%298, %c0_90, %c0_91], %301 {strides = array<i32>} : memref<8x16x32xbf16, #tpu.memory_space<vmem>>, vector<1x16x32xbf16>,
    %c5_i32 = arith.constant 5 : i32
    %302 = arith.index_cast %c5_i32 : i32 to index
    %c0_92 = arith.constant 0 : index
    %c0_93 = arith.constant 0 : index
    %303 = vector.load %arg1[%302, %c0_92, %c0_93] : memref<8x16x128xbf16, #tpu.memory_space<vmem>>, vector<1x16x128xbf16>
    %304 = vector.shape_cast %303 : vector<1x16x128xbf16> to vector<16x128xbf16>
    %305 = arith.truncf %266 : vector<16x32xf32> to vector<16x32xbf16>
    %c0_94 = arith.constant 0 : index
    %c0_95 = arith.constant 0 : index
    %306 = vector.load %arg3[%c0_94, %c0_95] : memref<32x128xbf16, #tpu.memory_space<vmem>>, vector<32x128xbf16>
    %cst_96 = arith.constant dense<0.000000e+00> : vector<16x128xf32>
    %307 = tpu.matmul %305, %306, %cst_96 {dimension_numbers = #tpu.dot_dimension_numbers<[1], [0], [0], [1], [0, 0, 1, 1], [], []>} : vector<16x32xbf16>, vector<32x128xbf16>, vector<16x128xf32> -> vector<16x128xf32>
    %308 = arith.extf %304 : vector<16x128xbf16> to vector<16x128xf32>
    %309 = arith.addf %307, %308 : vector<16x128xf32>
    %310 = vector.extract_strided_slice %309 {offsets = [0, 0], sizes = [16, 96], strides = [1, 1]} : vector<16x128xf32> to vector<16x96xf32>
    %311 = arith.negf %310 : vector<16x96xf32>
    %312 = math.exp %311 : vector<16x96xf32>
    %cst_97 = arith.constant 1.000000e+00 : f32
    %313 = vector.broadcast %cst_97 : f32 to vector<16x96xf32>
    %314 = arith.addf %313, %312 : vector<16x96xf32>
    %315 = arith.divf %313, %314 : vector<16x96xf32>
    %316 = vector.extract_strided_slice %315 {offsets = [0, 0], sizes = [16, 32], strides = [1, 1]} : vector<16x96xf32> to vector<16x32xf32>
    %317 = vector.extract_strided_slice %315 {offsets = [0, 32], sizes = [16, 32], strides = [1, 1]} : vector<16x96xf32> to vector<16x32xf32>
    %318 = vector.extract_strided_slice %315 {offsets = [0, 64], sizes = [16, 32], strides = [1, 1]} : vector<16x96xf32> to vector<16x32xf32>
    %319 = vector.extract_strided_slice %309 {offsets = [0, 96], sizes = [16, 32], strides = [1, 1]} : vector<16x128xf32> to vector<16x32xf32>
    %320 = math.tanh %319 : vector<16x32xf32>
    %321 = arith.mulf %317, %264 : vector<16x32xf32>
    %322 = arith.mulf %316, %320 : vector<16x32xf32>
    %323 = arith.addf %321, %322 : vector<16x32xf32>
    %324 = math.tanh %323 : vector<16x32xf32>
    %325 = arith.mulf %318, %324 : vector<16x32xf32>
    %326 = arith.truncf %325 : vector<16x32xf32> to vector<16x32xbf16>
    %327 = arith.index_cast %c5_i32 : i32 to index
    %c0_98 = arith.constant 0 : index
    %c0_99 = arith.constant 0 : index
    %328 = vector.load %arg5[%327, %c0_98, %c0_99] : memref<8x16x32xbf16, #tpu.memory_space<vmem>>, vector<1x16x32xbf16>
    %329 = vector.shape_cast %328 : vector<1x16x32xbf16> to vector<16x32xbf16>
    %330 = vector.shape_cast %326 : vector<16x32xbf16> to vector<1x16x32xbf16>
    tpu.vector_store %arg5[%327, %c0_98, %c0_99], %330 {strides = array<i32>} : memref<8x16x32xbf16, #tpu.memory_space<vmem>>, vector<1x16x32xbf16>,
    %c7_i32_100 = arith.constant 7 : i32
    %331 = arith.subi %c7_i32_100, %c5_i32 : i32
    %332 = arith.index_cast %331 : i32 to index
    %c0_101 = arith.constant 0 : index
    %c0_102 = arith.constant 0 : index
    %333 = vector.load %arg2[%332, %c0_101, %c0_102] : memref<8x16x128xbf16, #tpu.memory_space<vmem>>, vector<1x16x128xbf16>
    %334 = vector.shape_cast %333 : vector<1x16x128xbf16> to vector<16x128xbf16>
    %335 = arith.truncf %296 : vector<16x32xf32> to vector<16x32xbf16>
    %c0_103 = arith.constant 0 : index
    %c0_104 = arith.constant 0 : index
    %336 = vector.load %arg4[%c0_103, %c0_104] : memref<32x128xbf16, #tpu.memory_space<vmem>>, vector<32x128xbf16>
    %cst_105 = arith.constant dense<0.000000e+00> : vector<16x128xf32>
    %337 = tpu.matmul %335, %336, %cst_105 {dimension_numbers = #tpu.dot_dimension_numbers<[1], [0], [0], [1], [0, 0, 1, 1], [], []>} : vector<16x32xbf16>, vector<32x128xbf16>, vector<16x128xf32> -> vector<16x128xf32>
    %338 = arith.extf %334 : vector<16x128xbf16> to vector<16x128xf32>
    %339 = arith.addf %337, %338 : vector<16x128xf32>
    %340 = vector.extract_strided_slice %339 {offsets = [0, 0], sizes = [16, 96], strides = [1, 1]} : vector<16x128xf32> to vector<16x96xf32>
    %341 = arith.negf %340 : vector<16x96xf32>
    %342 = math.exp %341 : vector<16x96xf32>
    %cst_106 = arith.constant 1.000000e+00 : f32
    %343 = vector.broadcast %cst_106 : f32 to vector<16x96xf32>
    %344 = arith.addf %343, %342 : vector<16x96xf32>
    %345 = arith.divf %343, %344 : vector<16x96xf32>
    %346 = vector.extract_strided_slice %345 {offsets = [0, 0], sizes = [16, 32], strides = [1, 1]} : vector<16x96xf32> to vector<16x32xf32>
    %347 = vector.extract_strided_slice %345 {offsets = [0, 32], sizes = [16, 32], strides = [1, 1]} : vector<16x96xf32> to vector<16x32xf32>
    %348 = vector.extract_strided_slice %345 {offsets = [0, 64], sizes = [16, 32], strides = [1, 1]} : vector<16x96xf32> to vector<16x32xf32>
    %349 = vector.extract_strided_slice %339 {offsets = [0, 96], sizes = [16, 32], strides = [1, 1]} : vector<16x128xf32> to vector<16x32xf32>
    %350 = math.tanh %349 : vector<16x32xf32>
    %351 = arith.mulf %347, %294 : vector<16x32xf32>
    %352 = arith.mulf %346, %350 : vector<16x32xf32>
    %353 = arith.addf %351, %352 : vector<16x32xf32>
    %354 = math.tanh %353 : vector<16x32xf32>
    %355 = arith.mulf %348, %354 : vector<16x32xf32>
    %356 = arith.truncf %355 : vector<16x32xf32> to vector<16x32xbf16>
    %357 = arith.index_cast %331 : i32 to index
    %c0_107 = arith.constant 0 : index
    %c0_108 = arith.constant 0 : index
    %358 = vector.load %arg6[%357, %c0_107, %c0_108] : memref<8x16x32xbf16, #tpu.memory_space<vmem>>, vector<1x16x32xbf16>
    %359 = vector.shape_cast %358 : vector<1x16x32xbf16> to vector<16x32xbf16>
    %360 = vector.shape_cast %356 : vector<16x32xbf16> to vector<1x16x32xbf16>
    tpu.vector_store %arg6[%357, %c0_107, %c0_108], %360 {strides = array<i32>} : memref<8x16x32xbf16, #tpu.memory_space<vmem>>, vector<1x16x32xbf16>,
    %c6_i32 = arith.constant 6 : i32
    %361 = arith.index_cast %c6_i32 : i32 to index
    %c0_109 = arith.constant 0 : index
    %c0_110 = arith.constant 0 : index
    %362 = vector.load %arg1[%361, %c0_109, %c0_110] : memref<8x16x128xbf16, #tpu.memory_space<vmem>>, vector<1x16x128xbf16>
    %363 = vector.shape_cast %362 : vector<1x16x128xbf16> to vector<16x128xbf16>
    %364 = arith.truncf %325 : vector<16x32xf32> to vector<16x32xbf16>
    %c0_111 = arith.constant 0 : index
    %c0_112 = arith.constant 0 : index
    %365 = vector.load %arg3[%c0_111, %c0_112] : memref<32x128xbf16, #tpu.memory_space<vmem>>, vector<32x128xbf16>
    %cst_113 = arith.constant dense<0.000000e+00> : vector<16x128xf32>
    %366 = tpu.matmul %364, %365, %cst_113 {dimension_numbers = #tpu.dot_dimension_numbers<[1], [0], [0], [1], [0, 0, 1, 1], [], []>} : vector<16x32xbf16>, vector<32x128xbf16>, vector<16x128xf32> -> vector<16x128xf32>
    %367 = arith.extf %363 : vector<16x128xbf16> to vector<16x128xf32>
    %368 = arith.addf %366, %367 : vector<16x128xf32>
    %369 = vector.extract_strided_slice %368 {offsets = [0, 0], sizes = [16, 96], strides = [1, 1]} : vector<16x128xf32> to vector<16x96xf32>
    %370 = arith.negf %369 : vector<16x96xf32>
    %371 = math.exp %370 : vector<16x96xf32>
    %cst_114 = arith.constant 1.000000e+00 : f32
    %372 = vector.broadcast %cst_114 : f32 to vector<16x96xf32>
    %373 = arith.addf %372, %371 : vector<16x96xf32>
    %374 = arith.divf %372, %373 : vector<16x96xf32>
    %375 = vector.extract_strided_slice %374 {offsets = [0, 0], sizes = [16, 32], strides = [1, 1]} : vector<16x96xf32> to vector<16x32xf32>
    %376 = vector.extract_strided_slice %374 {offsets = [0, 32], sizes = [16, 32], strides = [1, 1]} : vector<16x96xf32> to vector<16x32xf32>
    %377 = vector.extract_strided_slice %374 {offsets = [0, 64], sizes = [16, 32], strides = [1, 1]} : vector<16x96xf32> to vector<16x32xf32>
    %378 = vector.extract_strided_slice %368 {offsets = [0, 96], sizes = [16, 32], strides = [1, 1]} : vector<16x128xf32> to vector<16x32xf32>
    %379 = math.tanh %378 : vector<16x32xf32>
    %380 = arith.mulf %376, %323 : vector<16x32xf32>
    %381 = arith.mulf %375, %379 : vector<16x32xf32>
    %382 = arith.addf %380, %381 : vector<16x32xf32>
    %383 = math.tanh %382 : vector<16x32xf32>
    %384 = arith.mulf %377, %383 : vector<16x32xf32>
    %385 = arith.truncf %384 : vector<16x32xf32> to vector<16x32xbf16>
    %386 = arith.index_cast %c6_i32 : i32 to index
    %c0_115 = arith.constant 0 : index
    %c0_116 = arith.constant 0 : index
    %387 = vector.load %arg5[%386, %c0_115, %c0_116] : memref<8x16x32xbf16, #tpu.memory_space<vmem>>, vector<1x16x32xbf16>
    %388 = vector.shape_cast %387 : vector<1x16x32xbf16> to vector<16x32xbf16>
    %389 = vector.shape_cast %385 : vector<16x32xbf16> to vector<1x16x32xbf16>
    tpu.vector_store %arg5[%386, %c0_115, %c0_116], %389 {strides = array<i32>} : memref<8x16x32xbf16, #tpu.memory_space<vmem>>, vector<1x16x32xbf16>,
    %c7_i32_117 = arith.constant 7 : i32
    %390 = arith.subi %c7_i32_117, %c6_i32 : i32
    %391 = arith.index_cast %390 : i32 to index
    %c0_118 = arith.constant 0 : index
    %c0_119 = arith.constant 0 : index
    %392 = vector.load %arg2[%391, %c0_118, %c0_119] : memref<8x16x128xbf16, #tpu.memory_space<vmem>>, vector<1x16x128xbf16>
    %393 = vector.shape_cast %392 : vector<1x16x128xbf16> to vector<16x128xbf16>
    %394 = arith.truncf %355 : vector<16x32xf32> to vector<16x32xbf16>
    %c0_120 = arith.constant 0 : index
    %c0_121 = arith.constant 0 : index
    %395 = vector.load %arg4[%c0_120, %c0_121] : memref<32x128xbf16, #tpu.memory_space<vmem>>, vector<32x128xbf16>
    %cst_122 = arith.constant dense<0.000000e+00> : vector<16x128xf32>
    %396 = tpu.matmul %394, %395, %cst_122 {dimension_numbers = #tpu.dot_dimension_numbers<[1], [0], [0], [1], [0, 0, 1, 1], [], []>} : vector<16x32xbf16>, vector<32x128xbf16>, vector<16x128xf32> -> vector<16x128xf32>
    %397 = arith.extf %393 : vector<16x128xbf16> to vector<16x128xf32>
    %398 = arith.addf %396, %397 : vector<16x128xf32>
    %399 = vector.extract_strided_slice %398 {offsets = [0, 0], sizes = [16, 96], strides = [1, 1]} : vector<16x128xf32> to vector<16x96xf32>
    %400 = arith.negf %399 : vector<16x96xf32>
    %401 = math.exp %400 : vector<16x96xf32>
    %cst_123 = arith.constant 1.000000e+00 : f32
    %402 = vector.broadcast %cst_123 : f32 to vector<16x96xf32>
    %403 = arith.addf %402, %401 : vector<16x96xf32>
    %404 = arith.divf %402, %403 : vector<16x96xf32>
    %405 = vector.extract_strided_slice %404 {offsets = [0, 0], sizes = [16, 32], strides = [1, 1]} : vector<16x96xf32> to vector<16x32xf32>
    %406 = vector.extract_strided_slice %404 {offsets = [0, 32], sizes = [16, 32], strides = [1, 1]} : vector<16x96xf32> to vector<16x32xf32>
    %407 = vector.extract_strided_slice %404 {offsets = [0, 64], sizes = [16, 32], strides = [1, 1]} : vector<16x96xf32> to vector<16x32xf32>
    %408 = vector.extract_strided_slice %398 {offsets = [0, 96], sizes = [16, 32], strides = [1, 1]} : vector<16x128xf32> to vector<16x32xf32>
    %409 = math.tanh %408 : vector<16x32xf32>
    %410 = arith.mulf %406, %353 : vector<16x32xf32>
    %411 = arith.mulf %405, %409 : vector<16x32xf32>
    %412 = arith.addf %410, %411 : vector<16x32xf32>
    %413 = math.tanh %412 : vector<16x32xf32>
    %414 = arith.mulf %407, %413 : vector<16x32xf32>
    %415 = arith.truncf %414 : vector<16x32xf32> to vector<16x32xbf16>
    %416 = arith.index_cast %390 : i32 to index
    %c0_124 = arith.constant 0 : index
    %c0_125 = arith.constant 0 : index
    %417 = vector.load %arg6[%416, %c0_124, %c0_125] : memref<8x16x32xbf16, #tpu.memory_space<vmem>>, vector<1x16x32xbf16>
    %418 = vector.shape_cast %417 : vector<1x16x32xbf16> to vector<16x32xbf16>
    %419 = vector.shape_cast %415 : vector<16x32xbf16> to vector<1x16x32xbf16>
    tpu.vector_store %arg6[%416, %c0_124, %c0_125], %419 {strides = array<i32>} : memref<8x16x32xbf16, #tpu.memory_space<vmem>>, vector<1x16x32xbf16>,
    %c7_i32_126 = arith.constant 7 : i32
    %420 = arith.index_cast %c7_i32_126 : i32 to index
    %c0_127 = arith.constant 0 : index
    %c0_128 = arith.constant 0 : index
    %421 = vector.load %arg1[%420, %c0_127, %c0_128] : memref<8x16x128xbf16, #tpu.memory_space<vmem>>, vector<1x16x128xbf16>
    %422 = vector.shape_cast %421 : vector<1x16x128xbf16> to vector<16x128xbf16>
    %423 = arith.truncf %384 : vector<16x32xf32> to vector<16x32xbf16>
    %c0_129 = arith.constant 0 : index
    %c0_130 = arith.constant 0 : index
    %424 = vector.load %arg3[%c0_129, %c0_130] : memref<32x128xbf16, #tpu.memory_space<vmem>>, vector<32x128xbf16>
    %cst_131 = arith.constant dense<0.000000e+00> : vector<16x128xf32>
    %425 = tpu.matmul %423, %424, %cst_131 {dimension_numbers = #tpu.dot_dimension_numbers<[1], [0], [0], [1], [0, 0, 1, 1], [], []>} : vector<16x32xbf16>, vector<32x128xbf16>, vector<16x128xf32> -> vector<16x128xf32>
    %426 = arith.extf %422 : vector<16x128xbf16> to vector<16x128xf32>
    %427 = arith.addf %425, %426 : vector<16x128xf32>
    %428 = vector.extract_strided_slice %427 {offsets = [0, 0], sizes = [16, 96], strides = [1, 1]} : vector<16x128xf32> to vector<16x96xf32>
    %429 = arith.negf %428 : vector<16x96xf32>
    %430 = math.exp %429 : vector<16x96xf32>
    %cst_132 = arith.constant 1.000000e+00 : f32
    %431 = vector.broadcast %cst_132 : f32 to vector<16x96xf32>
    %432 = arith.addf %431, %430 : vector<16x96xf32>
    %433 = arith.divf %431, %432 : vector<16x96xf32>
    %434 = vector.extract_strided_slice %433 {offsets = [0, 0], sizes = [16, 32], strides = [1, 1]} : vector<16x96xf32> to vector<16x32xf32>
    %435 = vector.extract_strided_slice %433 {offsets = [0, 32], sizes = [16, 32], strides = [1, 1]} : vector<16x96xf32> to vector<16x32xf32>
    %436 = vector.extract_strided_slice %433 {offsets = [0, 64], sizes = [16, 32], strides = [1, 1]} : vector<16x96xf32> to vector<16x32xf32>
    %437 = vector.extract_strided_slice %427 {offsets = [0, 96], sizes = [16, 32], strides = [1, 1]} : vector<16x128xf32> to vector<16x32xf32>
    %438 = math.tanh %437 : vector<16x32xf32>
    %439 = arith.mulf %435, %382 : vector<16x32xf32>
    %440 = arith.mulf %434, %438 : vector<16x32xf32>
    %441 = arith.addf %439, %440 : vector<16x32xf32>
    %442 = math.tanh %441 : vector<16x32xf32>
    %443 = arith.mulf %436, %442 : vector<16x32xf32>
    %444 = arith.truncf %443 : vector<16x32xf32> to vector<16x32xbf16>
    %445 = arith.index_cast %c7_i32_126 : i32 to index
    %c0_133 = arith.constant 0 : index
    %c0_134 = arith.constant 0 : index
    %446 = vector.load %arg5[%445, %c0_133, %c0_134] : memref<8x16x32xbf16, #tpu.memory_space<vmem>>, vector<1x16x32xbf16>
    %447 = vector.shape_cast %446 : vector<1x16x32xbf16> to vector<16x32xbf16>
    %448 = vector.shape_cast %444 : vector<16x32xbf16> to vector<1x16x32xbf16>
    tpu.vector_store %arg5[%445, %c0_133, %c0_134], %448 {strides = array<i32>} : memref<8x16x32xbf16, #tpu.memory_space<vmem>>, vector<1x16x32xbf16>,
    %c7_i32_135 = arith.constant 7 : i32
    %449 = arith.subi %c7_i32_135, %c7_i32_126 : i32
    %450 = arith.index_cast %449 : i32 to index
    %c0_136 = arith.constant 0 : index
    %c0_137 = arith.constant 0 : index
    %451 = vector.load %arg2[%450, %c0_136, %c0_137] : memref<8x16x128xbf16, #tpu.memory_space<vmem>>, vector<1x16x128xbf16>
    %452 = vector.shape_cast %451 : vector<1x16x128xbf16> to vector<16x128xbf16>
    %453 = arith.truncf %414 : vector<16x32xf32> to vector<16x32xbf16>
    %c0_138 = arith.constant 0 : index
    %c0_139 = arith.constant 0 : index
    %454 = vector.load %arg4[%c0_138, %c0_139] : memref<32x128xbf16, #tpu.memory_space<vmem>>, vector<32x128xbf16>
    %cst_140 = arith.constant dense<0.000000e+00> : vector<16x128xf32>
    %455 = tpu.matmul %453, %454, %cst_140 {dimension_numbers = #tpu.dot_dimension_numbers<[1], [0], [0], [1], [0, 0, 1, 1], [], []>} : vector<16x32xbf16>, vector<32x128xbf16>, vector<16x128xf32> -> vector<16x128xf32>
    %456 = arith.extf %452 : vector<16x128xbf16> to vector<16x128xf32>
    %457 = arith.addf %455, %456 : vector<16x128xf32>
    %458 = vector.extract_strided_slice %457 {offsets = [0, 0], sizes = [16, 96], strides = [1, 1]} : vector<16x128xf32> to vector<16x96xf32>
    %459 = arith.negf %458 : vector<16x96xf32>
    %460 = math.exp %459 : vector<16x96xf32>
    %cst_141 = arith.constant 1.000000e+00 : f32
    %461 = vector.broadcast %cst_141 : f32 to vector<16x96xf32>
    %462 = arith.addf %461, %460 : vector<16x96xf32>
    %463 = arith.divf %461, %462 : vector<16x96xf32>
    %464 = vector.extract_strided_slice %463 {offsets = [0, 0], sizes = [16, 32], strides = [1, 1]} : vector<16x96xf32> to vector<16x32xf32>
    %465 = vector.extract_strided_slice %463 {offsets = [0, 32], sizes = [16, 32], strides = [1, 1]} : vector<16x96xf32> to vector<16x32xf32>
    %466 = vector.extract_strided_slice %463 {offsets = [0, 64], sizes = [16, 32], strides = [1, 1]} : vector<16x96xf32> to vector<16x32xf32>
    %467 = vector.extract_strided_slice %457 {offsets = [0, 96], sizes = [16, 32], strides = [1, 1]} : vector<16x128xf32> to vector<16x32xf32>
    %468 = math.tanh %467 : vector<16x32xf32>
    %469 = arith.mulf %465, %412 : vector<16x32xf32>
    %470 = arith.mulf %464, %468 : vector<16x32xf32>
    %471 = arith.addf %469, %470 : vector<16x32xf32>
    %472 = math.tanh %471 : vector<16x32xf32>
    %473 = arith.mulf %466, %472 : vector<16x32xf32>
    %474 = arith.truncf %473 : vector<16x32xf32> to vector<16x32xbf16>
    %475 = arith.index_cast %449 : i32 to index
    %c0_142 = arith.constant 0 : index
    %c0_143 = arith.constant 0 : index
    %476 = vector.load %arg6[%475, %c0_142, %c0_143] : memref<8x16x32xbf16, #tpu.memory_space<vmem>>, vector<1x16x32xbf16>
    %477 = vector.shape_cast %476 : vector<1x16x32xbf16> to vector<16x32xbf16>
    %478 = vector.shape_cast %474 : vector<16x32xbf16> to vector<1x16x32xbf16>
    tpu.vector_store %arg6[%475, %c0_142, %c0_143], %478 {strides = array<i32>} : memref<8x16x32xbf16, #tpu.memory_space<vmem>>, vector<1x16x32xbf16>,
    %c8_i32 = arith.constant 8 : i32
    %c0_144 = arith.constant 0 : index
    %c0_145 = arith.constant 0 : index
    %479 = vector.load %arg7[%c0_144, %c0_145] : memref<16x32xf32, #tpu.memory_space<vmem>>, vector<16x32xf32>
    tpu.vector_store %arg7[%c0_144, %c0_145], %443 {strides = array<i32>} : memref<16x32xf32, #tpu.memory_space<vmem>>, vector<16x32xf32>,
    %c0_146 = arith.constant 0 : index
    %c0_147 = arith.constant 0 : index
    %480 = vector.load %arg8[%c0_146, %c0_147] : memref<16x32xf32, #tpu.memory_space<vmem>>, vector<16x32xf32>
    tpu.vector_store %arg8[%c0_146, %c0_147], %441 {strides = array<i32>} : memref<16x32xf32, #tpu.memory_space<vmem>>, vector<16x32xf32>,
    %c0_148 = arith.constant 0 : index
    %c0_149 = arith.constant 0 : index
    %481 = vector.load %arg9[%c0_148, %c0_149] : memref<16x32xf32, #tpu.memory_space<vmem>>, vector<16x32xf32>
    tpu.vector_store %arg9[%c0_148, %c0_149], %473 {strides = array<i32>} : memref<16x32xf32, #tpu.memory_space<vmem>>, vector<16x32xf32>,
    %c0_150 = arith.constant 0 : index
    %c0_151 = arith.constant 0 : index
    %482 = vector.load %arg10[%c0_150, %c0_151] : memref<16x32xf32, #tpu.memory_space<vmem>>, vector<16x32xf32>
    tpu.vector_store %arg10[%c0_150, %c0_151], %471 {strides = array<i32>} : memref<16x32xf32, #tpu.memory_space<vmem>>, vector<16x32xf32>,
    return
  }
  func.func @transform_0(%arg0: i32) -> (i32, i32, i32) {
    %c0_i32 = arith.constant 0 : i32
    %c0_i32_0 = arith.constant 0 : i32
    %c0_i32_1 = arith.constant 0 : i32
    return %arg0, %c0_i32, %c0_i32_0 : i32, i32, i32
  }
  func.func @transform_1(%arg0: i32) -> (i32, i32, i32) {
    %c0_i32 = arith.constant 0 : i32
    %0 = arith.subi %c0_i32, %arg0 : i32
    %c0_i32_0 = arith.constant 0 : i32
    %c0_i32_1 = arith.constant 0 : i32
    %c0_i32_2 = arith.constant 0 : i32
    return %0, %c0_i32_0, %c0_i32_1 : i32, i32, i32
  }
  func.func @transform_2(%arg0: i32) -> (i32, i32) {
    %c0_i32 = arith.constant 0 : i32
    %c0_i32_0 = arith.constant 0 : i32
    %c0_i32_1 = arith.constant 0 : i32
    return %c0_i32, %c0_i32_0 : i32, i32
  }
  func.func @transform_3(%arg0: i32) -> (i32, i32) {
    %c0_i32 = arith.constant 0 : i32
    %c0_i32_0 = arith.constant 0 : i32
    %c0_i32_1 = arith.constant 0 : i32
    return %c0_i32, %c0_i32_0 : i32, i32
  }
  func.func @transform_4(%arg0: i32) -> (i32, i32, i32) {
    %c0_i32 = arith.constant 0 : i32
    %c0_i32_0 = arith.constant 0 : i32
    %c0_i32_1 = arith.constant 0 : i32
    return %arg0, %c0_i32, %c0_i32_0 : i32, i32, i32
  }
  func.func @transform_5(%arg0: i32) -> (i32, i32, i32) {
    %c0_i32 = arith.constant 0 : i32
    %0 = arith.subi %c0_i32, %arg0 : i32
    %c0_i32_0 = arith.constant 0 : i32
    %c0_i32_1 = arith.constant 0 : i32
    %c0_i32_2 = arith.constant 0 : i32
    return %0, %c0_i32_0, %c0_i32_1 : i32, i32, i32
  }
}

</mosaic_0001>

<llo_original>
// kernel: bilstm_encoder.2
$region0: #{bilstm_encoder.2}
  #allocation0 [shape = 'u32[]', space=smem, size = 0x4, offset = 0x4, fixed_abs, tag = 'smem constant byte address 0x4 - core index']
  #allocation1 [shape = 'u32[144,128]{1,0:T(1,128)}', space=vmem, size = 0x12000, scoped, tag = 'internal scratch']
  #allocation2 [shape = 'f32[16,32]{1,0:T(8,128)}', space=vmem, size = 0x2000, scoped, tag = 'scratch operand']
  #allocation3 [shape = 'f32[16,32]{1,0:T(8,128)}', space=vmem, size = 0x2000, scoped, tag = 'scratch operand']
  #allocation4 [shape = 'f32[16,32]{1,0:T(8,128)}', space=vmem, size = 0x2000, scoped, tag = 'scratch operand']
  #allocation5 [shape = 'f32[16,32]{1,0:T(8,128)}', space=vmem, size = 0x2000, scoped, tag = 'scratch operand']
  %s0 = inlined_call_operand.vmem [shape: bf16[8,16,128], index: 0, kind: input, shape index: {}]
  %s1 = inlined_call_operand.vmem [shape: bf16[8,16,128], index: 1, kind: input, shape index: {}]
  %s2 = inlined_call_operand.vmem [shape: bf16[32,128], index: 2, kind: input, shape index: {}]
  %s3 = inlined_call_operand.vmem [shape: bf16[32,128], index: 3, kind: input, shape index: {}]
  %s4 = inlined_call_operand.vmem [shape: bf16[8,16,32], index: 4, kind: output, shape index: {0}]
  %s5 = inlined_call_operand.vmem [shape: bf16[8,16,32], index: 5, kind: output, shape index: {1}]
  %6 = xla_tuple %s4, %s5
  %s7 = sld [smem:[#allocation0]]
  $region38: #{bilstm_encoder.2} parent=0
    _
  %s9 = ssub.s32 1, %s7
  %s10 = scalar_select 0, %s9, %s7
  // Predicated region
  $region2: #{bilstm_encoder.2} parent=0 // pred_check
    _
  $region3: #{bilstm_encoder.2} parent=0 // pred_check_branch
    %12 = sbr.rel (0) target = $region5
  $region4: #{bilstm_encoder.2} parent=0 // pred_region
    _
  $region5: #{bilstm_encoder.2} parent=0 // pred_fallthru
    _
  // Predicated region
  $region6: #{bilstm_encoder.2} parent=0 // pred_check
    _
  $region7: #{bilstm_encoder.2} parent=0 // pred_check_branch
    %14 = sbr.rel (0) target = $region9
  $region8: #{bilstm_encoder.2} parent=0 // pred_region
    %s15 = ssub.s32 0, 0
    %s16 = smul.u32 8, %s15
    %p17 = scmp.lt.s32.totalorder %s16, 7
    %s18 = scalar_select %p17, %s16, 7
    %s19 = smul.addr %s18, 2
    %s20 = smul.addr %s19, 4
    %s21 = scalar_lea.vmem %s1, %s20
    %s22 = ssub.s32 0, 0
    %s23 = smul.u32 8, %s22
  $region9: #{bilstm_encoder.2} parent=0 // pred_fallthru
    _
  // Predicated region
  $region10: #{bilstm_encoder.2} parent=0 // pred_check
    _
  $region11: #{bilstm_encoder.2} parent=0 // pred_check_branch
    %25 = sbr.rel (0) target = $region13
  $region12: #{bilstm_encoder.2} parent=0 // pred_region
    _
  $region13: #{bilstm_encoder.2} parent=0 // pred_fallthru
    _
  // Predicated region
  $region14: #{bilstm_encoder.2} parent=0 // pred_check
    _
  $region15: #{bilstm_encoder.2} parent=0 // pred_check_branch
    %27 = sbr.rel (0) target = $region17
  $region16: #{bilstm_encoder.2} parent=0 // pred_region
    _
  $region17: #{bilstm_encoder.2} parent=0 // pred_fallthru
    _
  %s28 = ssub.s32 0, 0
  %s29 = smul.u32 8, %s28
  %p30 = scmp.lt.s32.totalorder %s29, 7
  %s31 = scalar_select %p30, %s29, 7
  %s32 = smul.addr %s31, 2
  %s33 = smul.addr %s32, 4
  %s34 = scalar_lea.vmem %s1, %s33
  %s35 = ssub.s32 0, 0
  %s36 = smul.u32 8, %s35
  %p37 = scmp.lt.s32.totalorder %s36, 7
  %s38 = scalar_select %p37, %s36, 7
  %s39 = smul.addr %s38, 2
  %s40 = smul.addr %s39, 4
  %s41 = scalar_lea.vmem %s5, %s40
  %s42 = ssub.s32 0, 0
  %s43 = smul.u32 8, %s42
  %p44 = scmp.lt.s32.totalorder %s43, 7
  %s45 = scalar_select %p44, %s43, 7
  %s46 = smul.addr %s45, 2
  %s47 = smul.addr %s46, 4
  %s48 = scalar_lea.vmem %s1, %s47
  %s49 = ssub.s32 0, 0
  %s50 = smul.u32 8, %s49
  %s51 = ssub.s32 0, 0
  %s52 = smul.u32 8, %s51
  %p53 = scmp.lt.s32.totalorder %s52, 7
  %s54 = scalar_select %p53, %s52, 7
  %s55 = smul.addr %s54, 2
  %s56 = smul.addr %s55, 4
  %s57 = scalar_lea.vmem %s5, %s56
  %s58 = ssub.s32 0, 0
  %s59 = smul.u32 8, %s58
  %p61 = scmp.eq.s32.totalorder 0, 0
  // Predicated region
  $region18: #{bilstm_encoder.2} parent=0 // pred_check
    %p62 = pneg %p61
  $region19: #{bilstm_encoder.2} parent=0 // pred_check_branch
    %64 = sbr.rel (%p62) target = $region21
  $region20: #{bilstm_encoder.2} parent=0 // pred_region
    %vm65 = vcmask 261120
    %66 = vst.msk [vmem:[#allocation2] sm:$0xff] %vm65, 0.0
    %67 = vst.msk [vmem:[#allocation2 + $0x8] sm:$0xff] %vm65, 0.0
    %68 = vst.msk [vmem:[#allocation3] sm:$0xff] %vm65, 0.0
    %69 = vst.msk [vmem:[#allocation3 + $0x8] sm:$0xff] %vm65, 0.0
    %70 = vst.msk [vmem:[#allocation4] sm:$0xff] %vm65, 0.0
    %71 = vst.msk [vmem:[#allocation4 + $0x8] sm:$0xff] %vm65, 0.0
    %72 = vst.msk [vmem:[#allocation5] sm:$0xff] %vm65, 0.0
    %73 = vst.msk [vmem:[#allocation5 + $0x8] sm:$0xff] %vm65, 0.0
  $region21: #{bilstm_encoder.2} parent=0 // pred_fallthru
    _
  %v74 = vld [vmem:[#allocation2] sm:$0xff]
  %v75 = vld [vmem:[#allocation2 + $0x8] sm:$0xff]
  %v76 = vld [vmem:[#allocation3] sm:$0xff]
  %v77 = vld [vmem:[#allocation3 + $0x8] sm:$0xff]
  %v78 = vld [vmem:[#allocation4] sm:$0xff]
  %v79 = vld [vmem:[#allocation4 + $0x8] sm:$0xff]
  %v80 = vld [vmem:[#allocation5] sm:$0xff]
  %v81 = vld [vmem:[#allocation5 + $0x8] sm:$0xff]
  %v82 = vld [vmem:[%s0] sm:$0xf]
  %v83 = vld [vmem:[%s0 + $0x4] sm:$0xf]
  %v84 = vpack.c.bf16 %v75, %v74
  %v85 = vld [vmem:[%s2] sm:$0xf]
  %v86 = vld [vmem:[%s2 + $0x4] sm:$0xf]
  %v87 = vld [vmem:[%s2 + $0x8] sm:$0xf]
  %v88 = vld [vmem:[%s2 + $0xc] sm:$0xf]
  %v89 = vunpack.c.l.bf16 %v82
  %v90 = vunpack.c.l.bf16 %v83
  %v95 = vunpack.c.l.b16 %v85
  %v96 = vunpack.c.l.b16 %v86
  %v97 = vunpack.c.l.b16 %v87
  %v98 = vunpack.c.l.b16 %v88
  %v99 = vpack.c.b16 %v96, %v95
  %v100 = vpack.c.b16 %v98, %v97
  %vm103 = vcmask 261120
  %v105 = vsel %vm103, %v84, 0
  %107 = vmatprep.subr.bf16.mxu0 0
  %108 = vmatpush1.bf16.msra.mxu0 0
  %109 = vmatprep.subr.bf16.mxu0 0
  %110 = vmatpush1.bf16.msra.mxu0 0
  %111 = vmatprep.subr.bf16.mxu0 0
  %112 = vmatpush1.bf16.msra.mxu0 0
  %113 = vmatprep.subr.bf16.mxu0 0
  %114 = vmatpush1.bf16.msra.mxu0 0
  %115 = vmatprep.subr.bf16.mxu0 0
  %116 = vmatpush1.bf16.msra.mxu0 0
  %117 = vmatprep.subr.bf16.mxu0 0
  %118 = vmatpush1.bf16.msra.mxu0 0
  %119 = vmatprep.subr.bf16.mxu0 0
  %120 = vmatpush1.bf16.msra.mxu0 %v100
  %121 = vmatprep.subr.bf16.mxu0 0
  %122 = vmatpush1.bf16.msra.mxu0 %v99
  %123 = vmatprep.subr.bf16.mxu0 0
  %124 = vmatpush2.bf16.msra.mxu0 0
  %125 = vmatprep.subr.bf16.mxu0 0
  %126 = vmatpush2.bf16.msra.mxu0 0
  %127 = vmatprep.subr.bf16.mxu0 0
  %128 = vmatpush2.bf16.msra.mxu0 0
  %129 = vmatprep.subr.bf16.mxu0 0
  %130 = vmatpush2.bf16.msra.mxu0 0
  %131 = vmatprep.subr.bf16.mxu0 0
  %132 = vmatpush2.bf16.msra.mxu0 0
  %133 = vmatprep.subr.bf16.mxu0 0
  %134 = vmatpush2.bf16.msra.mxu0 0
  %135 = vmatprep.subr.bf16.mxu0 0
  %136 = vmatpush2.bf16.msra.mxu0 0
  %137 = vmatprep.subr.bf16.mxu0 0
  %138 = vmatpush2.bf16.msra.mxu0 0
  %139 = vmatprep.mubr.bf16.mxu0 0
  %140 = vmatmul.mubr.bf16.gmra.mxu0 %v105
  %v141 = vpop.f32.mrf.mxu0
  %v142 = vadd.f32 %v89, %v141
  %v143 = vpop.f32.mrf.mxu0
  %v144 = vpop.f32.mrf.mxu0
  %v145 = vadd.f32 %v90, %v144
  %v146 = vpop.f32.mrf.mxu0
  %147 = vdwg.mxu0
  %v148 = vxor.u32 %v142, 2147483648
  %v149 = vxor.u32 %v145, 2147483648
  %v150 = vmul.f32 %v148, 1.442695
  %v151 = vpow.pop %v150
  %v152 = vmul.f32 %v149, 1.442695
  %v153 = vpow.pop %v152
  %v154 = vadd.f32 %v151, 1.0
  %v155 = vadd.f32 %v153, 1.0
  %v156 = vrcp.pop %v154
  %v157 = vmul.f32 1.0, %v156
  %v158 = vrcp.pop %v155
  %v159 = vmul.f32 1.0, %v158
  %v160 = vtanh.pop %v142
  %v161 = vtanh.pop %v145
  %164 = vrot.lane.b32.xlu0 %v76, 32
  %v165 = vpop.permute.xlu0 %164
  %166 = vrot.lane.b32.xlu0 %v77, 32
  %v167 = vpop.permute.xlu0 %166
  %v170 = vmul.f32 %v157, %v165
  %v171 = vmul.f32 %v159, %v167
  %174 = vrot.lane.b32.xlu0 %v160, 32
  %v175 = vpop.permute.xlu0 %174
  %176 = vrot.lane.b32.xlu0 %v161, 32
  %v177 = vpop.permute.xlu0 %176
  %v180 = vmul.f32 %v157, %v175
  %v181 = vmul.f32 %v159, %v177
  %184 = vrot.lane.b32.xlu0 %v180, 32
  %v185 = vpop.permute.xlu0 %184
  %186 = vrot.lane.b32.xlu0 %v181, 32
  %v187 = vpop.permute.xlu0 %186
  %v190 = vadd.f32 %v170, %v185
  %v191 = vadd.f32 %v171, %v187
  %v192 = vtanh.pop %v190
  %v193 = vtanh.pop %v191
  %196 = vrot.lane.b32.xlu0 %v192, 32
  %v197 = vpop.permute.xlu0 %196
  %198 = vrot.lane.b32.xlu0 %v193, 32
  %v199 = vpop.permute.xlu0 %198
  %v202 = vmul.f32 %v157, %v197
  %v203 = vmul.f32 %v159, %v199
  %v204 = vpack.c.bf16 %v203, %v202
  %v206 = vunpack.c.l.b16 %v204
  %v207 = vunpack.c.h.b16 %v204
  %v208 = vpack.c.b16 %v206, %v206
  %v209 = vpack.c.b16 %v207, %v207
  %210 = vrot.lane.b32.xlu0 %v208, 64
  %v211 = vpop.permute.xlu0 %210
  %212 = vrot.lane.b32.xlu0 %v209, 64
  %v213 = vpop.permute.xlu0 %212
  %vm216 = vcmask 257024
  %217 = vst.msk [vmem:[%s4] sm:$0xf] %vm216, %v211
  %218 = vst.msk [vmem:[%s4 + $0x4] sm:$0xf] %vm216, %v213
  %s219 = scalar_lea.vmem %s48, 56
  %v220 = vld [vmem:[%s219] sm:$0xf]
  %v221 = vld [vmem:[%s219 + $0x4] sm:$0xf]
  %v222 = vpack.c.bf16 %v79, %v78
  %v223 = vld [vmem:[%s3] sm:$0xf]
  %v224 = vld [vmem:[%s3 + $0x4] sm:$0xf]
  %v225 = vld [vmem:[%s3 + $0x8] sm:$0xf]
  %v226 = vld [vmem:[%s3 + $0xc] sm:$0xf]
  %v227 = vunpack.c.l.bf16 %v220
  %v228 = vunpack.c.l.bf16 %v221
  %v233 = vunpack.c.l.b16 %v223
  %v234 = vunpack.c.l.b16 %v224
  %v235 = vunpack.c.l.b16 %v225
  %v236 = vunpack.c.l.b16 %v226
  %v237 = vpack.c.b16 %v234, %v233
  %v238 = vpack.c.b16 %v236, %v235
  %v242 = vsel %vm103, %v222, 0
  %244 = vmatprep.subr.bf16.mxu0 0
  %245 = vmatpush1.bf16.msra.mxu0 0
  %246 = vmatprep.subr.bf16.mxu0 0
  %247 = vmatpush1.bf16.msra.mxu0 0
  %248 = vmatprep.subr.bf16.mxu0 0
  %249 = vmatpush1.bf16.msra.mxu0 0
  %250 = vmatprep.subr.bf16.mxu0 0
  %251 = vmatpush1.bf16.msra.mxu0 0
  %252 = vmatprep.subr.bf16.mxu0 0
  %253 = vmatpush1.bf16.msra.mxu0 0
  %254 = vmatprep.subr.bf16.mxu0 0
  %255 = vmatpush1.bf16.msra.mxu0 0
  %256 = vmatprep.subr.bf16.mxu0 0
  %257 = vmatpush1.bf16.msra.mxu0 %v238
  %258 = vmatprep.subr.bf16.mxu0 0
  %259 = vmatpush1.bf16.msra.mxu0 %v237
  %260 = vmatprep.subr.bf16.mxu0 0
  %261 = vmatpush2.bf16.msra.mxu0 0
  %262 = vmatprep.subr.bf16.mxu0 0
  %263 = vmatpush2.bf16.msra.mxu0 0
  %264 = vmatprep.subr.bf16.mxu0 0
  %265 = vmatpush2.bf16.msra.mxu0 0
  %266 = vmatprep.subr.bf16.mxu0 0
  %267 = vmatpush2.bf16.msra.mxu0 0
  %268 = vmatprep.subr.bf16.mxu0 0
  %269 = vmatpush2.bf16.msra.mxu0 0
  %270 = vmatprep.subr.bf16.mxu0 0
  %271 = vmatpush2.bf16.msra.mxu0 0
  %272 = vmatprep.subr.bf16.mxu0 0
  %273 = vmatpush2.bf16.msra.mxu0 0
  %274 = vmatprep.subr.bf16.mxu0 0
  %275 = vmatpush2.bf16.msra.mxu0 0
  %276 = vmatprep.mubr.bf16.mxu0 0
  %277 = vmatmul.mubr.bf16.gmra.mxu0 %v242
  %v278 = vpop.f32.mrf.mxu0
  %v279 = vadd.f32 %v227, %v278
  %v280 = vpop.f32.mrf.mxu0
  %v281 = vpop.f32.mrf.mxu0
  %v282 = vadd.f32 %v228, %v281
  %v283 = vpop.f32.mrf.mxu0
  %284 = vdwg.mxu0
  %v285 = vxor.u32 %v279, 2147483648
  %v286 = vxor.u32 %v282, 2147483648
  %v287 = vmul.f32 %v285, 1.442695
  %v288 = vpow.pop %v287
  %v289 = vmul.f32 %v286, 1.442695
  %v290 = vpow.pop %v289
  %v291 = vadd.f32 %v288, 1.0
  %v292 = vadd.f32 %v290, 1.0
  %v293 = vrcp.pop %v291
  %v294 = vmul.f32 1.0, %v293
  %v295 = vrcp.pop %v292
  %v296 = vmul.f32 1.0, %v295
  %v297 = vtanh.pop %v279
  %v298 = vtanh.pop %v282
  %301 = vrot.lane.b32.xlu0 %v80, 32
  %v302 = vpop.permute.xlu0 %301
  %303 = vrot.lane.b32.xlu0 %v81, 32
  %v304 = vpop.permute.xlu0 %303
  %v307 = vmul.f32 %v294, %v302
  %v308 = vmul.f32 %v296, %v304
  %311 = vrot.lane.b32.xlu0 %v297, 32
  %v312 = vpop.permute.xlu0 %311
  %313 = vrot.lane.b32.xlu0 %v298, 32
  %v314 = vpop.permute.xlu0 %313
  %v317 = vmul.f32 %v294, %v312
  %v318 = vmul.f32 %v296, %v314
  %321 = vrot.lane.b32.xlu0 %v317, 32
  %v322 = vpop.permute.xlu0 %321
  %323 = vrot.lane.b32.xlu0 %v318, 32
  %v324 = vpop.permute.xlu0 %323
  %v327 = vadd.f32 %v307, %v322
  %v328 = vadd.f32 %v308, %v324
  %v329 = vtanh.pop %v327
  %v330 = vtanh.pop %v328
  %333 = vrot.lane.b32.xlu0 %v329, 32
  %v334 = vpop.permute.xlu0 %333
  %335 = vrot.lane.b32.xlu0 %v330, 32
  %v336 = vpop.permute.xlu0 %335
  %v339 = vmul.f32 %v294, %v334
  %v340 = vmul.f32 %v296, %v336
  %v341 = vpack.c.bf16 %v340, %v339
  %v343 = vunpack.c.l.b16 %v341
  %v344 = vunpack.c.h.b16 %v341
  %v345 = vpack.c.b16 %v343, %v343
  %v346 = vpack.c.b16 %v344, %v344
  %347 = vrot.lane.b32.xlu0 %v345, 64
  %v348 = vpop.permute.xlu0 %347
  %349 = vrot.lane.b32.xlu0 %v346, 64
  %v350 = vpop.permute.xlu0 %349
  %s353 = scalar_lea.vmem %s57, 56
  %354 = vst.msk [vmem:[%s353] sm:$0xf] %vm216, %v348
  %355 = vst.msk [vmem:[%s353 + $0x4] sm:$0xf] %vm216, %v350
  %s356 = scalar_lea.vmem %s0, 8
  %v357 = vld [vmem:[%s356] sm:$0xf]
  %v358 = vld [vmem:[%s356 + $0x4] sm:$0xf]
  %v359 = vld [vmem:[%s2] sm:$0xf]
  %v360 = vld [vmem:[%s2 + $0x4] sm:$0xf]
  %v361 = vld [vmem:[%s2 + $0x8] sm:$0xf]
  %v362 = vld [vmem:[%s2 + $0xc] sm:$0xf]
  %v363 = vunpack.c.l.bf16 %v357
  %v364 = vunpack.c.l.bf16 %v358
  %365 = vrot.lane.b32.xlu0 %v204, 64
  %v366 = vpop.permute.xlu0 %365
  %v371 = vunpack.c.l.b16 %v359
  %v372 = vunpack.c.l.b16 %v360
  %v373 = vunpack.c.l.b16 %v361
  %v374 = vunpack.c.l.b16 %v362
  %v375 = vpack.c.b16 %v372, %v371
  %v376 = vpack.c.b16 %v374, %v373
  %v380 = vsel %vm103, %v366, 0
  %382 = vmatprep.subr.bf16.mxu0 0
  %383 = vmatpush1.bf16.msra.mxu0 0
  %384 = vmatprep.subr.bf16.mxu0 0
  %385 = vmatpush1.bf16.msra.mxu0 0
  %386 = vmatprep.subr.bf16.mxu0 0
  %387 = vmatpush1.bf16.msra.mxu0 0
  %388 = vmatprep.subr.bf16.mxu0 0
  %389 = vmatpush1.bf16.msra.mxu0 0
  %390 = vmatprep.subr.bf16.mxu0 0
  %391 = vmatpush1.bf16.msra.mxu0 0
  %392 = vmatprep.subr.bf16.mxu0 0
  %393 = vmatpush1.bf16.msra.mxu0 0
  %394 = vmatprep.subr.bf16.mxu0 0
  %395 = vmatpush1.bf16.msra.mxu0 %v376
  %396 = vmatprep.subr.bf16.mxu0 0
  %397 = vmatpush1.bf16.msra.mxu0 %v375
  %398 = vmatprep.subr.bf16.mxu0 0
  %399 = vmatpush2.bf16.msra.mxu0 0
  %400 = vmatprep.subr.bf16.mxu0 0
  %401 = vmatpush2.bf16.msra.mxu0 0
  %402 = vmatprep.subr.bf16.mxu0 0
  %403 = vmatpush2.bf16.msra.mxu0 0
  %404 = vmatprep.subr.bf16.mxu0 0
  %405 = vmatpush2.bf16.msra.mxu0 0
  %406 = vmatprep.subr.bf16.mxu0 0
  %407 = vmatpush2.bf16.msra.mxu0 0
  %408 = vmatprep.subr.bf16.mxu0 0
  %409 = vmatpush2.bf16.msra.mxu0 0
  %410 = vmatprep.subr.bf16.mxu0 0
  %411 = vmatpush2.bf16.msra.mxu0 0
  %412 = vmatprep.subr.bf16.mxu0 0
  %413 = vmatpush2.bf16.msra.mxu0 0
  %414 = vmatprep.mubr.bf16.mxu0 0
  %415 = vmatmul.mubr.bf16.gmra.mxu0 %v380
  %v416 = vpop.f32.mrf.mxu0
  %v417 = vadd.f32 %v363, %v416
  %v418 = vpop.f32.mrf.mxu0
  %v419 = vpop.f32.mrf.mxu0
  %v420 = vadd.f32 %v364, %v419
  %v421 = vpop.f32.mrf.mxu0
  %422 = vdwg.mxu0
  %v423 = vxor.u32 %v417, 2147483648
  %v424 = vxor.u32 %v420, 2147483648
  %v425 = vmul.f32 %v423, 1.442695
  %v426 = vpow.pop %v425
  %v427 = vmul.f32 %v424, 1.442695
  %v428 = vpow.pop %v427
  %v429 = vadd.f32 %v426, 1.0
  %v430 = vadd.f32 %v428, 1.0
  %v431 = vrcp.pop %v429
  %v432 = vmul.f32 1.0, %v431
  %v433 = vrcp.pop %v430
  %v434 = vmul.f32 1.0, %v433
  %v435 = vtanh.pop %v417
  %v436 = vtanh.pop %v420
  %v437 = vmul.f32 %v432, %v190
  %v438 = vmul.f32 %v434, %v191
  %441 = vrot.lane.b32.xlu0 %v435, 32
  %v442 = vpop.permute.xlu0 %441
  %443 = vrot.lane.b32.xlu0 %v436, 32
  %v444 = vpop.permute.xlu0 %443
  %v447 = vmul.f32 %v432, %v442
  %v448 = vmul.f32 %v434, %v444
  %451 = vrot.lane.b32.xlu0 %v447, 32
  %v452 = vpop.permute.xlu0 %451
  %453 = vrot.lane.b32.xlu0 %v448, 32
  %v454 = vpop.permute.xlu0 %453
  %v457 = vadd.f32 %v437, %v452
  %v458 = vadd.f32 %v438, %v454
  %v459 = vtanh.pop %v457
  %v460 = vtanh.pop %v458
  %463 = vrot.lane.b32.xlu0 %v459, 32
  %v464 = vpop.permute.xlu0 %463
  %465 = vrot.lane.b32.xlu0 %v460, 32
  %v466 = vpop.permute.xlu0 %465
  %v469 = vmul.f32 %v432, %v464
  %v470 = vmul.f32 %v434, %v466
  %v471 = vpack.c.bf16 %v470, %v469
  %v473 = vunpack.c.l.b16 %v471
  %v474 = vunpack.c.h.b16 %v471
  %v475 = vpack.c.b16 %v473, %v473
  %v476 = vpack.c.b16 %v474, %v474
  %477 = vrot.lane.b32.xlu0 %v475, 64
  %v478 = vpop.permute.xlu0 %477
  %479 = vrot.lane.b32.xlu0 %v476, 64
  %v480 = vpop.permute.xlu0 %479
  %s483 = scalar_lea.vmem %s4, 8
  %484 = vst.msk [vmem:[%s483] sm:$0xf] %vm216, %v478
  %485 = vst.msk [vmem:[%s483 + $0x4] sm:$0xf] %vm216, %v480
  %s486 = scalar_lea.vmem %s48, 48
  %v487 = vld [vmem:[%s486] sm:$0xf]
  %v488 = vld [vmem:[%s486 + $0x4] sm:$0xf]
  %v489 = vld [vmem:[%s3] sm:$0xf]
  %v490 = vld [vmem:[%s3 + $0x4] sm:$0xf]
  %v491 = vld [vmem:[%s3 + $0x8] sm:$0xf]
  %v492 = vld [vmem:[%s3 + $0xc] sm:$0xf]
  %v493 = vunpack.c.l.bf16 %v487
  %v494 = vunpack.c.l.bf16 %v488
  %495 = vrot.lane.b32.xlu0 %v341, 64
  %v496 = vpop.permute.xlu0 %495
  %v501 = vunpack.c.l.b16 %v489
  %v502 = vunpack.c.l.b16 %v490
  %v503 = vunpack.c.l.b16 %v491
  %v504 = vunpack.c.l.b16 %v492
  %v505 = vpack.c.b16 %v502, %v501
  %v506 = vpack.c.b16 %v504, %v503
  %v510 = vsel %vm103, %v496, 0
  %512 = vmatprep.subr.bf16.mxu0 0
  %513 = vmatpush1.bf16.msra.mxu0 0
  %514 = vmatprep.subr.bf16.mxu0 0
  %515 = vmatpush1.bf16.msra.mxu0 0
  %516 = vmatprep.subr.bf16.mxu0 0
  %517 = vmatpush1.bf16.msra.mxu0 0
  %518 = vmatprep.subr.bf16.mxu0 0
  %519 = vmatpush1.bf16.msra.mxu0 0
  %520 = vmatprep.subr.bf16.mxu0 0
  %521 = vmatpush1.bf16.msra.mxu0 0
  %522 = vmatprep.subr.bf16.mxu0 0
  %523 = vmatpush1.bf16.msra.mxu0 0
  %524 = vmatprep.subr.bf16.mxu0 0
  %525 = vmatpush1.bf16.msra.mxu0 %v506
  %526 = vmatprep.subr.bf16.mxu0 0
  %527 = vmatpush1.bf16.msra.mxu0 %v505
  %528 = vmatprep.subr.bf16.mxu0 0
  %529 = vmatpush2.bf16.msra.mxu0 0
  %530 = vmatprep.subr.bf16.mxu0 0
  %531 = vmatpush2.bf16.msra.mxu0 0
  %532 = vmatprep.subr.bf16.mxu0 0
  %533 = vmatpush2.bf16.msra.mxu0 0
  %534 = vmatprep.subr.bf16.mxu0 0
  %535 = vmatpush2.bf16.msra.mxu0 0
  %536 = vmatprep.subr.bf16.mxu0 0
  %537 = vmatpush2.bf16.msra.mxu0 0
  %538 = vmatprep.subr.bf16.mxu0 0
  %539 = vmatpush2.bf16.msra.mxu0 0
  %540 = vmatprep.subr.bf16.mxu0 0
  %541 = vmatpush2.bf16.msra.mxu0 0
  %542 = vmatprep.subr.bf16.mxu0 0
  %543 = vmatpush2.bf16.msra.mxu0 0
  %544 = vmatprep.mubr.bf16.mxu0 0
  %545 = vmatmul.mubr.bf16.gmra.mxu0 %v510
  %v546 = vpop.f32.mrf.mxu0
  %v547 = vadd.f32 %v493, %v546
  %v548 = vpop.f32.mrf.mxu0
  %v549 = vpop.f32.mrf.mxu0
  %v550 = vadd.f32 %v494, %v549
  %v551 = vpop.f32.mrf.mxu0
  %552 = vdwg.mxu0
  %v553 = vxor.u32 %v547, 2147483648
  %v554 = vxor.u32 %v550, 2147483648
  %v555 = vmul.f32 %v553, 1.442695
  %v556 = vpow.pop %v555
  %v557 = vmul.f32 %v554, 1.442695
  %v558 = vpow.pop %v557
  %v559 = vadd.f32 %v556, 1.0
  %v560 = vadd.f32 %v558, 1.0
  %v561 = vrcp.pop %v559
  %v562 = vmul.f32 1.0, %v561
  %v563 = vrcp.pop %v560
  %v564 = vmul.f32 1.0, %v563
  %v565 = vtanh.pop %v547
  %v566 = vtanh.pop %v550
  %v567 = vmul.f32 %v562, %v327
  %v568 = vmul.f32 %v564, %v328
  %571 = vrot.lane.b32.xlu0 %v565, 32
  %v572 = vpop.permute.xlu0 %571
  %573 = vrot.lane.b32.xlu0 %v566, 32
  %v574 = vpop.permute.xlu0 %573
  %v577 = vmul.f32 %v562, %v572
  %v578 = vmul.f32 %v564, %v574
  %581 = vrot.lane.b32.xlu0 %v577, 32
  %v582 = vpop.permute.xlu0 %581
  %583 = vrot.lane.b32.xlu0 %v578, 32
  %v584 = vpop.permute.xlu0 %583
  %v587 = vadd.f32 %v567, %v582
  %v588 = vadd.f32 %v568, %v584
  %v589 = vtanh.pop %v587
  %v590 = vtanh.pop %v588
  %593 = vrot.lane.b32.xlu0 %v589, 32
  %v594 = vpop.permute.xlu0 %593
  %595 = vrot.lane.b32.xlu0 %v590, 32
  %v596 = vpop.permute.xlu0 %595
  %v599 = vmul.f32 %v562, %v594
  %v600 = vmul.f32 %v564, %v596
  %v601 = vpack.c.bf16 %v600, %v599
  %v603 = vunpack.c.l.b16 %v601
  %v604 = vunpack.c.h.b16 %v601
  %v605 = vpack.c.b16 %v603, %v603
  %v606 = vpack.c.b16 %v604, %v604
  %607 = vrot.lane.b32.xlu0 %v605, 64
  %v608 = vpop.permute.xlu0 %607
  %609 = vrot.lane.b32.xlu0 %v606, 64
  %v610 = vpop.permute.xlu0 %609
  %s613 = scalar_lea.vmem %s57, 48
  %614 = vst.msk [vmem:[%s613] sm:$0xf] %vm216, %v608
  %615 = vst.msk [vmem:[%s613 + $0x4] sm:$0xf] %vm216, %v610
  %s616 = scalar_lea.vmem %s0, 16
  %v617 = vld [vmem:[%s616] sm:$0xf]
  %v618 = vld [vmem:[%s616 + $0x4] sm:$0xf]
  %v619 = vld [vmem:[%s2] sm:$0xf]
  %v620 = vld [vmem:[%s2 + $0x4] sm:$0xf]
  %v621 = vld [vmem:[%s2 + $0x8] sm:$0xf]
  %v622 = vld [vmem:[%s2 + $0xc] sm:$0xf]
  %v623 = vunpack.c.l.bf16 %v617
  %v624 = vunpack.c.l.bf16 %v618
  %625 = vrot.lane.b32.xlu0 %v471, 64
  %v626 = vpop.permute.xlu0 %625
  %v631 = vunpack.c.l.b16 %v619
  %v632 = vunpack.c.l.b16 %v620
  %v633 = vunpack.c.l.b16 %v621
  %v634 = vunpack.c.l.b16 %v622
  %v635 = vpack.c.b16 %v632, %v631
  %v636 = vpack.c.b16 %v634, %v633
  %v640 = vsel %vm103, %v626, 0
  %642 = vmatprep.subr.bf16.mxu0 0
  %643 = vmatpush1.bf16.msra.mxu0 0
  %644 = vmatprep.subr.bf16.mxu0 0
  %645 = vmatpush1.bf16.msra.mxu0 0
  %646 = vmatprep.subr.bf16.mxu0 0
  %647 = vmatpush1.bf16.msra.mxu0 0
  %648 = vmatprep.subr.bf16.mxu0 0
  %649 = vmatpush1.bf16.msra.mxu0 0
  %650 = vmatprep.subr.bf16.mxu0 0
  %651 = vmatpush1.bf16.msra.mxu0 0
  %652 = vmatprep.subr.bf16.mxu0 0
  %653 = vmatpush1.bf16.msra.mxu0 0
  %654 = vmatprep.subr.bf16.mxu0 0
  %655 = vmatpush1.bf16.msra.mxu0 %v636
  %656 = vmatprep.subr.bf16.mxu0 0
  %657 = vmatpush1.bf16.msra.mxu0 %v635
  %658 = vmatprep.subr.bf16.mxu0 0
  %659 = vmatpush2.bf16.msra.mxu0 0
  %660 = vmatprep.subr.bf16.mxu0 0
  %661 = vmatpush2.bf16.msra.mxu0 0
  %662 = vmatprep.subr.bf16.mxu0 0
  %663 = vmatpush2.bf16.msra.mxu0 0
  %664 = vmatprep.subr.bf16.mxu0 0
  %665 = vmatpush2.bf16.msra.mxu0 0
  %666 = vmatprep.subr.bf16.mxu0 0
  %667 = vmatpush2.bf16.msra.mxu0 0
  %668 = vmatprep.subr.bf16.mxu0 0
  %669 = vmatpush2.bf16.msra.mxu0 0
  %670 = vmatprep.subr.bf16.mxu0 0
  %671 = vmatpush2.bf16.msra.mxu0 0
  %672 = vmatprep.subr.bf16.mxu0 0
  %673 = vmatpush2.bf16.msra.mxu0 0
  %674 = vmatprep.mubr.bf16.mxu0 0
  %675 = vmatmul.mubr.bf16.gmra.mxu0 %v640
  %v676 = vpop.f32.mrf.mxu0
  %v677 = vadd.f32 %v623, %v676
  %v678 = vpop.f32.mrf.mxu0
  %v679 = vpop.f32.mrf.mxu0
  %v680 = vadd.f32 %v624, %v679
  %v681 = vpop.f32.mrf.mxu0
  %682 = vdwg.mxu0
  %v683 = vxor.u32 %v677, 2147483648
  %v684 = vxor.u32 %v680, 2147483648
  %v685 = vmul.f32 %v683, 1.442695
  %v686 = vpow.pop %v685
  %v687 = vmul.f32 %v684, 1.442695
  %v688 = vpow.pop %v687
  %v689 = vadd.f32 %v686, 1.0
  %v690 = vadd.f32 %v688, 1.0
  %v691 = vrcp.pop %v689
  %v692 = vmul.f32 1.0, %v691
  %v693 = vrcp.pop %v690
  %v694 = vmul.f32 1.0, %v693
  %v695 = vtanh.pop %v677
  %v696 = vtanh.pop %v680
  %v697 = vmul.f32 %v692, %v457
  %v698 = vmul.f32 %v694, %v458
  %701 = vrot.lane.b32.xlu0 %v695, 32
  %v702 = vpop.permute.xlu0 %701
  %703 = vrot.lane.b32.xlu0 %v696, 32
  %v704 = vpop.permute.xlu0 %703
  %v707 = vmul.f32 %v692, %v702
  %v708 = vmul.f32 %v694, %v704
  %711 = vrot.lane.b32.xlu0 %v707, 32
  %v712 = vpop.permute.xlu0 %711
  %713 = vrot.lane.b32.xlu0 %v708, 32
  %v714 = vpop.permute.xlu0 %713
  %v717 = vadd.f32 %v697, %v712
  %v718 = vadd.f32 %v698, %v714
  %v719 = vtanh.pop %v717
  %v720 = vtanh.pop %v718
  %723 = vrot.lane.b32.xlu0 %v719, 32
  %v724 = vpop.permute.xlu0 %723
  %725 = vrot.lane.b32.xlu0 %v720, 32
  %v726 = vpop.permute.xlu0 %725
  %v729 = vmul.f32 %v692, %v724
  %v730 = vmul.f32 %v694, %v726
  %v731 = vpack.c.bf16 %v730, %v729
  %v733 = vunpack.c.l.b16 %v731
  %v734 = vunpack.c.h.b16 %v731
  %v735 = vpack.c.b16 %v733, %v733
  %v736 = vpack.c.b16 %v734, %v734
  %737 = vrot.lane.b32.xlu0 %v735, 64
  %v738 = vpop.permute.xlu0 %737
  %739 = vrot.lane.b32.xlu0 %v736, 64
  %v740 = vpop.permute.xlu0 %739
  %s743 = scalar_lea.vmem %s4, 16
  %744 = vst.msk [vmem:[%s743] sm:$0xf] %vm216, %v738
  %745 = vst.msk [vmem:[%s743 + $0x4] sm:$0xf] %vm216, %v740
  %s746 = scalar_lea.vmem %s48, 40
  %v747 = vld [vmem:[%s746] sm:$0xf]
  %v748 = vld [vmem:[%s746 + $0x4] sm:$0xf]
  %v749 = vld [vmem:[%s3] sm:$0xf]
  %v750 = vld [vmem:[%s3 + $0x4] sm:$0xf]
  %v751 = vld [vmem:[%s3 + $0x8] sm:$0xf]
  %v752 = vld [vmem:[%s3 + $0xc] sm:$0xf]
  %v753 = vunpack.c.l.bf16 %v747
  %v754 = vunpack.c.l.bf16 %v748
  %755 = vrot.lane.b32.xlu0 %v601, 64
  %v756 = vpop.permute.xlu0 %755
  %v761 = vunpack.c.l.b16 %v749
  %v762 = vunpack.c.l.b16 %v750
  %v763 = vunpack.c.l.b16 %v751
  %v764 = vunpack.c.l.b16 %v752
  %v765 = vpack.c.b16 %v762, %v761
  %v766 = vpack.c.b16 %v764, %v763
  %v770 = vsel %vm103, %v756, 0
  %772 = vmatprep.subr.bf16.mxu0 0
  %773 = vmatpush1.bf16.msra.mxu0 0
  %774 = vmatprep.subr.bf16.mxu0 0
  %775 = vmatpush1.bf16.msra.mxu0 0
  %776 = vmatprep.subr.bf16.mxu0 0
  %777 = vmatpush1.bf16.msra.mxu0 0
  %778 = vmatprep.subr.bf16.mxu0 0
  %779 = vmatpush1.bf16.msra.mxu0 0
  %780 = vmatprep.subr.bf16.mxu0 0
  %781 = vmatpush1.bf16.msra.mxu0 0
  %782 = vmatprep.subr.bf16.mxu0 0
  %783 = vmatpush1.bf16.msra.mxu0 0
  %784 = vmatprep.subr.bf16.mxu0 0
  %785 = vmatpush1.bf16.msra.mxu0 %v766
  %786 = vmatprep.subr.bf16.mxu0 0
  %787 = vmatpush1.bf16.msra.mxu0 %v765
  %788 = vmatprep.subr.bf16.mxu0 0
  %789 = vmatpush2.bf16.msra.mxu0 0
  %790 = vmatprep.subr.bf16.mxu0 0
  %791 = vmatpush2.bf16.msra.mxu0 0
  %792 = vmatprep.subr.bf16.mxu0 0
  %793 = vmatpush2.bf16.msra.mxu0 0
  %794 = vmatprep.subr.bf16.mxu0 0
  %795 = vmatpush2.bf16.msra.mxu0 0
  %796 = vmatprep.subr.bf16.mxu0 0
  %797 = vmatpush2.bf16.msra.mxu0 0
  %798 = vmatprep.subr.bf16.mxu0 0
  %799 = vmatpush2.bf16.msra.mxu0 0
  %800 = vmatprep.subr.bf16.mxu0 0
  %801 = vmatpush2.bf16.msra.mxu0 0
  %802 = vmatprep.subr.bf16.mxu0 0
  %803 = vmatpush2.bf16.msra.mxu0 0
  %804 = vmatprep.mubr.bf16.mxu0 0
  %805 = vmatmul.mubr.bf16.gmra.mxu0 %v770
  %v806 = vpop.f32.mrf.mxu0
  %v807 = vadd.f32 %v753, %v806
  %v808 = vpop.f32.mrf.mxu0
  %v809 = vpop.f32.mrf.mxu0
  %v810 = vadd.f32 %v754, %v809
  %v811 = vpop.f32.mrf.mxu0
  %812 = vdwg.mxu0
  %v813 = vxor.u32 %v807, 2147483648
  %v814 = vxor.u32 %v810, 2147483648
  %v815 = vmul.f32 %v813, 1.442695
  %v816 = vpow.pop %v815
  %v817 = vmul.f32 %v814, 1.442695
  %v818 = vpow.pop %v817
  %v819 = vadd.f32 %v816, 1.0
  %v820 = vadd.f32 %v818, 1.0
  %v821 = vrcp.pop %v819
  %v822 = vmul.f32 1.0, %v821
  %v823 = vrcp.pop %v820
  %v824 = vmul.f32 1.0, %v823
  %v825 = vtanh.pop %v807
  %v826 = vtanh.pop %v810
  %v827 = vmul.f32 %v822, %v587
  %v828 = vmul.f32 %v824, %v588
  %831 = vrot.lane.b32.xlu0 %v825, 32
  %v832 = vpop.permute.xlu0 %831
  %833 = vrot.lane.b32.xlu0 %v826, 32
  %v834 = vpop.permute.xlu0 %833
  %v837 = vmul.f32 %v822, %v832
  %v838 = vmul.f32 %v824, %v834
  %841 = vrot.lane.b32.xlu0 %v837, 32
  %v842 = vpop.permute.xlu0 %841
  %843 = vrot.lane.b32.xlu0 %v838, 32
  %v844 = vpop.permute.xlu0 %843
  %v847 = vadd.f32 %v827, %v842
  %v848 = vadd.f32 %v828, %v844
  %v849 = vtanh.pop %v847
  %v850 = vtanh.pop %v848
  %853 = vrot.lane.b32.xlu0 %v849, 32
  %v854 = vpop.permute.xlu0 %853
  %855 = vrot.lane.b32.xlu0 %v850, 32
  %v856 = vpop.permute.xlu0 %855
  %v859 = vmul.f32 %v822, %v854
  %v860 = vmul.f32 %v824, %v856
  %v861 = vpack.c.bf16 %v860, %v859
  %v863 = vunpack.c.l.b16 %v861
  %v864 = vunpack.c.h.b16 %v861
  %v865 = vpack.c.b16 %v863, %v863
  %v866 = vpack.c.b16 %v864, %v864
  %867 = vrot.lane.b32.xlu0 %v865, 64
  %v868 = vpop.permute.xlu0 %867
  %869 = vrot.lane.b32.xlu0 %v866, 64
  %v870 = vpop.permute.xlu0 %869
  %s873 = scalar_lea.vmem %s57, 40
  %874 = vst.msk [vmem:[%s873] sm:$0xf] %vm216, %v868
  %875 = vst.msk [vmem:[%s873 + $0x4] sm:$0xf] %vm216, %v870
  %s876 = scalar_lea.vmem %s0, 24
  %v877 = vld [vmem:[%s876] sm:$0xf]
  %v878 = vld [vmem:[%s876 + $0x4] sm:$0xf]
  %v879 = vld [vmem:[%s2] sm:$0xf]
  %v880 = vld [vmem:[%s2 + $0x4] sm:$0xf]
  %v881 = vld [vmem:[%s2 + $0x8] sm:$0xf]
  %v882 = vld [vmem:[%s2 + $0xc] sm:$0xf]
  %v883 = vunpack.c.l.bf16 %v877
  %v884 = vunpack.c.l.bf16 %v878
  %885 = vrot.lane.b32.xlu0 %v731, 64
  %v886 = vpop.permute.xlu0 %885
  %v891 = vunpack.c.l.b16 %v879
  %v892 = vunpack.c.l.b16 %v880
  %v893 = vunpack.c.l.b16 %v881
  %v894 = vunpack.c.l.b16 %v882
  %v895 = vpack.c.b16 %v892, %v891
  %v896 = vpack.c.b16 %v894, %v893
  %v900 = vsel %vm103, %v886, 0
  %902 = vmatprep.subr.bf16.mxu0 0
  %903 = vmatpush1.bf16.msra.mxu0 0
  %904 = vmatprep.subr.bf16.mxu0 0
  %905 = vmatpush1.bf16.msra.mxu0 0
  %906 = vmatprep.subr.bf16.mxu0 0
  %907 = vmatpush1.bf16.msra.mxu0 0
  %908 = vmatprep.subr.bf16.mxu0 0
  %909 = vmatpush1.bf16.msra.mxu0 0
  %910 = vmatprep.subr.bf16.mxu0 0
  %911 = vmatpush1.bf16.msra.mxu0 0
  %912 = vmatprep.subr.bf16.mxu0 0
  %913 = vmatpush1.bf16.msra.mxu0 0
  %914 = vmatprep.subr.bf16.mxu0 0
  %915 = vmatpush1.bf16.msra.mxu0 %v896
  %916 = vmatprep.subr.bf16.mxu0 0
  %917 = vmatpush1.bf16.msra.mxu0 %v895
  %918 = vmatprep.subr.bf16.mxu0 0
  %919 = vmatpush2.bf16.msra.mxu0 0
  %920 = vmatprep.subr.bf16.mxu0 0
  %921 = vmatpush2.bf16.msra.mxu0 0
  %922 = vmatprep.subr.bf16.mxu0 0
  %923 = vmatpush2.bf16.msra.mxu0 0
  %924 = vmatprep.subr.bf16.mxu0 0
  %925 = vmatpush2.bf16.msra.mxu0 0
  %926 = vmatprep.subr.bf16.mxu0 0
  %927 = vmatpush2.bf16.msra.mxu0 0
  %928 = vmatprep.subr.bf16.mxu0 0
  %929 = vmatpush2.bf16.msra.mxu0 0
  %930 = vmatprep.subr.bf16.mxu0 0
  %931 = vmatpush2.bf16.msra.mxu0 0
  %932 = vmatprep.subr.bf16.mxu0 0
  %933 = vmatpush2.bf16.msra.mxu0 0
  %934 = vmatprep.mubr.bf16.mxu0 0
  %935 = vmatmul.mubr.bf16.gmra.mxu0 %v900
  %v936 = vpop.f32.mrf.mxu0
  %v937 = vadd.f32 %v883, %v936
  %v938 = vpop.f32.mrf.mxu0
  %v939 = vpop.f32.mrf.mxu0
  %v940 = vadd.f32 %v884, %v939
  %v941 = vpop.f32.mrf.mxu0
  %942 = vdwg.mxu0
  %v943 = vxor.u32 %v937, 2147483648
  %v944 = vxor.u32 %v940, 2147483648
  %v945 = vmul.f32 %v943, 1.442695
  %v946 = vpow.pop %v945
  %v947 = vmul.f32 %v944, 1.442695
  %v948 = vpow.pop %v947
  %v949 = vadd.f32 %v946, 1.0
  %v950 = vadd.f32 %v948, 1.0
  %v951 = vrcp.pop %v949
  %v952 = vmul.f32 1.0, %v951
  %v953 = vrcp.pop %v950
  %v954 = vmul.f32 1.0, %v953
  %v955 = vtanh.pop %v937
  %v956 = vtanh.pop %v940
  %v957 = vmul.f32 %v952, %v717
  %v958 = vmul.f32 %v954, %v718
  %961 = vrot.lane.b32.xlu0 %v955, 32
  %v962 = vpop.permute.xlu0 %961
  %963 = vrot.lane.b32.xlu0 %v956, 32
  %v964 = vpop.permute.xlu0 %963
  %v967 = vmul.f32 %v952, %v962
  %v968 = vmul.f32 %v954, %v964
  %971 = vrot.lane.b32.xlu0 %v967, 32
  %v972 = vpop.permute.xlu0 %971
  %973 = vrot.lane.b32.xlu0 %v968, 32
  %v974 = vpop.permute.xlu0 %973
  %v977 = vadd.f32 %v957, %v972
  %v978 = vadd.f32 %v958, %v974
  %v979 = vtanh.pop %v977
  %v980 = vtanh.pop %v978
  %983 = vrot.lane.b32.xlu0 %v979, 32
  %v984 = vpop.permute.xlu0 %983
  %985 = vrot.lane.b32.xlu0 %v980, 32
  %v986 = vpop.permute.xlu0 %985
  %v989 = vmul.f32 %v952, %v984
  %v990 = vmul.f32 %v954, %v986
  %v991 = vpack.c.bf16 %v990, %v989
  %v993 = vunpack.c.l.b16 %v991
  %v994 = vunpack.c.h.b16 %v991
  %v995 = vpack.c.b16 %v993, %v993
  %v996 = vpack.c.b16 %v994, %v994
  %997 = vrot.lane.b32.xlu0 %v995, 64
  %v998 = vpop.permute.xlu0 %997
  %999 = vrot.lane.b32.xlu0 %v996, 64
  %v1000 = vpop.permute.xlu0 %999
  %s1003 = scalar_lea.vmem %s4, 24
  %1004 = vst.msk [vmem:[%s1003] sm:$0xf] %vm216, %v998
  %1005 = vst.msk [vmem:[%s1003 + $0x4] sm:$0xf] %vm216, %v1000
  %s1006 = scalar_lea.vmem %s48, 32
  %v1007 = vld [vmem:[%s1006] sm:$0xf]
  %v1008 = vld [vmem:[%s1006 + $0x4] sm:$0xf]
  %v1009 = vld [vmem:[%s3] sm:$0xf]
  %v1010 = vld [vmem:[%s3 + $0x4] sm:$0xf]
  %v1011 = vld [vmem:[%s3 + $0x8] sm:$0xf]
  %v1012 = vld [vmem:[%s3 + $0xc] sm:$0xf]
  %v1013 = vunpack.c.l.bf16 %v1007
  %v1014 = vunpack.c.l.bf16 %v1008
  %1015 = vrot.lane.b32.xlu0 %v861, 64
  %v1016 = vpop.permute.xlu0 %1015
  %v1021 = vunpack.c.l.b16 %v1009
  %v1022 = vunpack.c.l.b16 %v1010
  %v1023 = vunpack.c.l.b16 %v1011
  %v1024 = vunpack.c.l.b16 %v1012
  %v1025 = vpack.c.b16 %v1022, %v1021
  %v1026 = vpack.c.b16 %v1024, %v1023
  %v1030 = vsel %vm103, %v1016, 0
  %1032 = vmatprep.subr.bf16.mxu0 0
  %1033 = vmatpush1.bf16.msra.mxu0 0
  %1034 = vmatprep.subr.bf16.mxu0 0
  %1035 = vmatpush1.bf16.msra.mxu0 0
  %1036 = vmatprep.subr.bf16.mxu0 0
  %1037 = vmatpush1.bf16.msra.mxu0 0
  %1038 = vmatprep.subr.bf16.mxu0 0
  %1039 = vmatpush1.bf16.msra.mxu0 0
  %1040 = vmatprep.subr.bf16.mxu0 0
  %1041 = vmatpush1.bf16.msra.mxu0 0
  %1042 = vmatprep.subr.bf16.mxu0 0
  %1043 = vmatpush1.bf16.msra.mxu0 0
  %1044 = vmatprep.subr.bf16.mxu0 0
  %1045 = vmatpush1.bf16.msra.mxu0 %v1026
  %1046 = vmatprep.subr.bf16.mxu0 0
  %1047 = vmatpush1.bf16.msra.mxu0 %v1025
  %1048 = vmatprep.subr.bf16.mxu0 0
  %1049 = vmatpush2.bf16.msra.mxu0 0
  %1050 = vmatprep.subr.bf16.mxu0 0
  %1051 = vmatpush2.bf16.msra.mxu0 0
  %1052 = vmatprep.subr.bf16.mxu0 0
  %1053 = vmatpush2.bf16.msra.mxu0 0
  %1054 = vmatprep.subr.bf16.mxu0 0
  %1055 = vmatpush2.bf16.msra.mxu0 0
  %1056 = vmatprep.subr.bf16.mxu0 0
  %1057 = vmatpush2.bf16.msra.mxu0 0
  %1058 = vmatprep.subr.bf16.mxu0 0
  %1059 = vmatpush2.bf16.msra.mxu0 0
  %1060 = vmatprep.subr.bf16.mxu0 0
  %1061 = vmatpush2.bf16.msra.mxu0 0
  %1062 = vmatprep.subr.bf16.mxu0 0
  %1063 = vmatpush2.bf16.msra.mxu0 0
  %1064 = vmatprep.mubr.bf16.mxu0 0
  %1065 = vmatmul.mubr.bf16.gmra.mxu0 %v1030
  %v1066 = vpop.f32.mrf.mxu0
  %v1067 = vadd.f32 %v1013, %v1066
  %v1068 = vpop.f32.mrf.mxu0
  %v1069 = vpop.f32.mrf.mxu0
  %v1070 = vadd.f32 %v1014, %v1069
  %v1071 = vpop.f32.mrf.mxu0
  %1072 = vdwg.mxu0
  %v1073 = vxor.u32 %v1067, 2147483648
  %v1074 = vxor.u32 %v1070, 2147483648
  %v1075 = vmul.f32 %v1073, 1.442695
  %v1076 = vpow.pop %v1075
  %v1077 = vmul.f32 %v1074, 1.442695
  %v1078 = vpow.pop %v1077
  %v1079 = vadd.f32 %v1076, 1.0
  %v1080 = vadd.f32 %v1078, 1.0
  %v1081 = vrcp.pop %v1079
  %v1082 = vmul.f32 1.0, %v1081
  %v1083 = vrcp.pop %v1080
  %v1084 = vmul.f32 1.0, %v1083
  %v1085 = vtanh.pop %v1067
  %v1086 = vtanh.pop %v1070
  %v1087 = vmul.f32 %v1082, %v847
  %v1088 = vmul.f32 %v1084, %v848
  %1091 = vrot.lane.b32.xlu0 %v1085, 32
  %v1092 = vpop.permute.xlu0 %1091
  %1093 = vrot.lane.b32.xlu0 %v1086, 32
  %v1094 = vpop.permute.xlu0 %1093
  %v1097 = vmul.f32 %v1082, %v1092
  %v1098 = vmul.f32 %v1084, %v1094
  %1101 = vrot.lane.b32.xlu0 %v1097, 32
  %v1102 = vpop.permute.xlu0 %1101
  %1103 = vrot.lane.b32.xlu0 %v1098, 32
  %v1104 = vpop.permute.xlu0 %1103
  %v1107 = vadd.f32 %v1087, %v1102
  %v1108 = vadd.f32 %v1088, %v1104
  %v1109 = vtanh.pop %v1107
  %v1110 = vtanh.pop %v1108
  %1113 = vrot.lane.b32.xlu0 %v1109, 32
  %v1114 = vpop.permute.xlu0 %1113
  %1115 = vrot.lane.b32.xlu0 %v1110, 32
  %v1116 = vpop.permute.xlu0 %1115
  %v1119 = vmul.f32 %v1082, %v1114
  %v1120 = vmul.f32 %v1084, %v1116
  %v1121 = vpack.c.bf16 %v1120, %v1119
  %v1123 = vunpack.c.l.b16 %v1121
  %v1124 = vunpack.c.h.b16 %v1121
  %v1125 = vpack.c.b16 %v1123, %v1123
  %v1126 = vpack.c.b16 %v1124, %v1124
  %1127 = vrot.lane.b32.xlu0 %v1125, 64
  %v1128 = vpop.permute.xlu0 %1127
  %1129 = vrot.lane.b32.xlu0 %v1126, 64
  %v1130 = vpop.permute.xlu0 %1129
  %s1133 = scalar_lea.vmem %s57, 32
  %1134 = vst.msk [vmem:[%s1133] sm:$0xf] %vm216, %v1128
  %1135 = vst.msk [vmem:[%s1133 + $0x4] sm:$0xf] %vm216, %v1130
  %s1136 = scalar_lea.vmem %s0, 32
  %v1137 = vld [vmem:[%s1136] sm:$0xf]
  %v1138 = vld [vmem:[%s1136 + $0x4] sm:$0xf]
  %v1139 = vld [vmem:[%s2] sm:$0xf]
  %v1140 = vld [vmem:[%s2 + $0x4] sm:$0xf]
  %v1141 = vld [vmem:[%s2 + $0x8] sm:$0xf]
  %v1142 = vld [vmem:[%s2 + $0xc] sm:$0xf]
  %v1143 = vunpack.c.l.bf16 %v1137
  %v1144 = vunpack.c.l.bf16 %v1138
  %1145 = vrot.lane.b32.xlu0 %v991, 64
  %v1146 = vpop.permute.xlu0 %1145
  %v1151 = vunpack.c.l.b16 %v1139
  %v1152 = vunpack.c.l.b16 %v1140
  %v1153 = vunpack.c.l.b16 %v1141
  %v1154 = vunpack.c.l.b16 %v1142
  %v1155 = vpack.c.b16 %v1152, %v1151
  %v1156 = vpack.c.b16 %v1154, %v1153
  %v1160 = vsel %vm103, %v1146, 0
  %1162 = vmatprep.subr.bf16.mxu0 0
  %1163 = vmatpush1.bf16.msra.mxu0 0
  %1164 = vmatprep.subr.bf16.mxu0 0
  %1165 = vmatpush1.bf16.msra.mxu0 0
  %1166 = vmatprep.subr.bf16.mxu0 0
  %1167 = vmatpush1.bf16.msra.mxu0 0
  %1168 = vmatprep.subr.bf16.mxu0 0
  %1169 = vmatpush1.bf16.msra.mxu0 0
  %1170 = vmatprep.subr.bf16.mxu0 0
  %1171 = vmatpush1.bf16.msra.mxu0 0
  %1172 = vmatprep.subr.bf16.mxu0 0
  %1173 = vmatpush1.bf16.msra.mxu0 0
  %1174 = vmatprep.subr.bf16.mxu0 0
  %1175 = vmatpush1.bf16.msra.mxu0 %v1156
  %1176 = vmatprep.subr.bf16.mxu0 0
  %1177 = vmatpush1.bf16.msra.mxu0 %v1155
  %1178 = vmatprep.subr.bf16.mxu0 0
  %1179 = vmatpush2.bf16.msra.mxu0 0
  %1180 = vmatprep.subr.bf16.mxu0 0
  %1181 = vmatpush2.bf16.msra.mxu0 0
  %1182 = vmatprep.subr.bf16.mxu0 0
  %1183 = vmatpush2.bf16.msra.mxu0 0
  %1184 = vmatprep.subr.bf16.mxu0 0
  %1185 = vmatpush2.bf16.msra.mxu0 0
  %1186 = vmatprep.subr.bf16.mxu0 0
  %1187 = vmatpush2.bf16.msra.mxu0 0
  %1188 = vmatprep.subr.bf16.mxu0 0
  %1189 = vmatpush2.bf16.msra.mxu0 0
  %1190 = vmatprep.subr.bf16.mxu0 0
  %1191 = vmatpush2.bf16.msra.mxu0 0
  %1192 = vmatprep.subr.bf16.mxu0 0
  %1193 = vmatpush2.bf16.msra.mxu0 0
  %1194 = vmatprep.mubr.bf16.mxu0 0
  %1195 = vmatmul.mubr.bf16.gmra.mxu0 %v1160
  %v1196 = vpop.f32.mrf.mxu0
  %v1197 = vadd.f32 %v1143, %v1196
  %v1198 = vpop.f32.mrf.mxu0
  %v1199 = vpop.f32.mrf.mxu0
  %v1200 = vadd.f32 %v1144, %v1199
  %v1201 = vpop.f32.mrf.mxu0
  %1202 = vdwg.mxu0
  %v1203 = vxor.u32 %v1197, 2147483648
  %v1204 = vxor.u32 %v1200, 2147483648
  %v1205 = vmul.f32 %v1203, 1.442695
  %v1206 = vpow.pop %v1205
  %v1207 = vmul.f32 %v1204, 1.442695
  %v1208 = vpow.pop %v1207
  %v1209 = vadd.f32 %v1206, 1.0
  %v1210 = vadd.f32 %v1208, 1.0
  %v1211 = vrcp.pop %v1209
  %v1212 = vmul.f32 1.0, %v1211
  %v1213 = vrcp.pop %v1210
  %v1214 = vmul.f32 1.0, %v1213
  %v1215 = vtanh.pop %v1197
  %v1216 = vtanh.pop %v1200
  %v1217 = vmul.f32 %v1212, %v977
  %v1218 = vmul.f32 %v1214, %v978
  %1221 = vrot.lane.b32.xlu0 %v1215, 32
  %v1222 = vpop.permute.xlu0 %1221
  %1223 = vrot.lane.b32.xlu0 %v1216, 32
  %v1224 = vpop.permute.xlu0 %1223
  %v1227 = vmul.f32 %v1212, %v1222
  %v1228 = vmul.f32 %v1214, %v1224
  %1231 = vrot.lane.b32.xlu0 %v1227, 32
  %v1232 = vpop.permute.xlu0 %1231
  %1233 = vrot.lane.b32.xlu0 %v1228, 32
  %v1234 = vpop.permute.xlu0 %1233
  %v1237 = vadd.f32 %v1217, %v1232
  %v1238 = vadd.f32 %v1218, %v1234
  %v1239 = vtanh.pop %v1237
  %v1240 = vtanh.pop %v1238
  %1243 = vrot.lane.b32.xlu0 %v1239, 32
  %v1244 = vpop.permute.xlu0 %1243
  %1245 = vrot.lane.b32.xlu0 %v1240, 32
  %v1246 = vpop.permute.xlu0 %1245
  %v1249 = vmul.f32 %v1212, %v1244
  %v1250 = vmul.f32 %v1214, %v1246
  %v1251 = vpack.c.bf16 %v1250, %v1249
  %v1253 = vunpack.c.l.b16 %v1251
  %v1254 = vunpack.c.h.b16 %v1251
  %v1255 = vpack.c.b16 %v1253, %v1253
  %v1256 = vpack.c.b16 %v1254, %v1254
  %1257 = vrot.lane.b32.xlu0 %v1255, 64
  %v1258 = vpop.permute.xlu0 %1257
  %1259 = vrot.lane.b32.xlu0 %v1256, 64
  %v1260 = vpop.permute.xlu0 %1259
  %s1263 = scalar_lea.vmem %s4, 32
  %1264 = vst.msk [vmem:[%s1263] sm:$0xf] %vm216, %v1258
  %1265 = vst.msk [vmem:[%s1263 + $0x4] sm:$0xf] %vm216, %v1260
  %s1266 = scalar_lea.vmem %s48, 24
  %v1267 = vld [vmem:[%s1266] sm:$0xf]
  %v1268 = vld [vmem:[%s1266 + $0x4] sm:$0xf]
  %v1269 = vld [vmem:[%s3] sm:$0xf]
  %v1270 = vld [vmem:[%s3 + $0x4] sm:$0xf]
  %v1271 = vld [vmem:[%s3 + $0x8] sm:$0xf]
  %v1272 = vld [vmem:[%s3 + $0xc] sm:$0xf]
  %v1273 = vunpack.c.l.bf16 %v1267
  %v1274 = vunpack.c.l.bf16 %v1268
  %1275 = vrot.lane.b32.xlu0 %v1121, 64
  %v1276 = vpop.permute.xlu0 %1275
  %v1281 = vunpack.c.l.b16 %v1269
  %v1282 = vunpack.c.l.b16 %v1270
  %v1283 = vunpack.c.l.b16 %v1271
  %v1284 = vunpack.c.l.b16 %v1272
  %v1285 = vpack.c.b16 %v1282, %v1281
  %v1286 = vpack.c.b16 %v1284, %v1283
  %v1290 = vsel %vm103, %v1276, 0
  %1292 = vmatprep.subr.bf16.mxu0 0
  %1293 = vmatpush1.bf16.msra.mxu0 0
  %1294 = vmatprep.subr.bf16.mxu0 0
  %1295 = vmatpush1.bf16.msra.mxu0 0
  %1296 = vmatprep.subr.bf16.mxu0 0
  %1297 = vmatpush1.bf16.msra.mxu0 0
  %1298 = vmatprep.subr.bf16.mxu0 0
  %1299 = vmatpush1.bf16.msra.mxu0 0
  %1300 = vmatprep.subr.bf16.mxu0 0
  %1301 = vmatpush1.bf16.msra.mxu0 0
  %1302 = vmatprep.subr.bf16.mxu0 0
  %1303 = vmatpush1.bf16.msra.mxu0 0
  %1304 = vmatprep.subr.bf16.mxu0 0
  %1305 = vmatpush1.bf16.msra.mxu0 %v1286
  %1306 = vmatprep.subr.bf16.mxu0 0
  %1307 = vmatpush1.bf16.msra.mxu0 %v1285
  %1308 = vmatprep.subr.bf16.mxu0 0
  %1309 = vmatpush2.bf16.msra.mxu0 0
  %1310 = vmatprep.subr.bf16.mxu0 0
  %1311 = vmatpush2.bf16.msra.mxu0 0
  %1312 = vmatprep.subr.bf16.mxu0 0
  %1313 = vmatpush2.bf16.msra.mxu0 0
  %1314 = vmatprep.subr.bf16.mxu0 0
  %1315 = vmatpush2.bf16.msra.mxu0 0
  %1316 = vmatprep.subr.bf16.mxu0 0
  %1317 = vmatpush2.bf16.msra.mxu0 0
  %1318 = vmatprep.subr.bf16.mxu0 0
  %1319 = vmatpush2.bf16.msra.mxu0 0
  %1320 = vmatprep.subr.bf16.mxu0 0
  %1321 = vmatpush2.bf16.msra.mxu0 0
  %1322 = vmatprep.subr.bf16.mxu0 0
  %1323 = vmatpush2.bf16.msra.mxu0 0
  %1324 = vmatprep.mubr.bf16.mxu0 0
  %1325 = vmatmul.mubr.bf16.gmra.mxu0 %v1290
  %v1326 = vpop.f32.mrf.mxu0
  %v1327 = vadd.f32 %v1273, %v1326
  %v1328 = vpop.f32.mrf.mxu0
  %v1329 = vpop.f32.mrf.mxu0
  %v1330 = vadd.f32 %v1274, %v1329
  %v1331 = vpop.f32.mrf.mxu0
  %1332 = vdwg.mxu0
  %v1333 = vxor.u32 %v1327, 2147483648
  %v1334 = vxor.u32 %v1330, 2147483648
  %v1335 = vmul.f32 %v1333, 1.442695
  %v1336 = vpow.pop %v1335
  %v1337 = vmul.f32 %v1334, 1.442695
  %v1338 = vpow.pop %v1337
  %v1339 = vadd.f32 %v1336, 1.0
  %v1340 = vadd.f32 %v1338, 1.0
  %v1341 = vrcp.pop %v1339
  %v1342 = vmul.f32 1.0, %v1341
  %v1343 = vrcp.pop %v1340
  %v1344 = vmul.f32 1.0, %v1343
  %v1345 = vtanh.pop %v1327
  %v1346 = vtanh.pop %v1330
  %v1347 = vmul.f32 %v1342, %v1107
  %v1348 = vmul.f32 %v1344, %v1108
  %1351 = vrot.lane.b32.xlu0 %v1345, 32
  %v1352 = vpop.permute.xlu0 %1351
  %1353 = vrot.lane.b32.xlu0 %v1346, 32
  %v1354 = vpop.permute.xlu0 %1353
  %v1357 = vmul.f32 %v1342, %v1352
  %v1358 = vmul.f32 %v1344, %v1354
  %1361 = vrot.lane.b32.xlu0 %v1357, 32
  %v1362 = vpop.permute.xlu0 %1361
  %1363 = vrot.lane.b32.xlu0 %v1358, 32
  %v1364 = vpop.permute.xlu0 %1363
  %v1367 = vadd.f32 %v1347, %v1362
  %v1368 = vadd.f32 %v1348, %v1364
  %v1369 = vtanh.pop %v1367
  %v1370 = vtanh.pop %v1368
  %1373 = vrot.lane.b32.xlu0 %v1369, 32
  %v1374 = vpop.permute.xlu0 %1373
  %1375 = vrot.lane.b32.xlu0 %v1370, 32
  %v1376 = vpop.permute.xlu0 %1375
  %v1379 = vmul.f32 %v1342, %v1374
  %v1380 = vmul.f32 %v1344, %v1376
  %v1381 = vpack.c.bf16 %v1380, %v1379
  %v1383 = vunpack.c.l.b16 %v1381
  %v1384 = vunpack.c.h.b16 %v1381
  %v1385 = vpack.c.b16 %v1383, %v1383
  %v1386 = vpack.c.b16 %v1384, %v1384
  %1387 = vrot.lane.b32.xlu0 %v1385, 64
  %v1388 = vpop.permute.xlu0 %1387
  %1389 = vrot.lane.b32.xlu0 %v1386, 64
  %v1390 = vpop.permute.xlu0 %1389
  %s1393 = scalar_lea.vmem %s57, 24
  %1394 = vst.msk [vmem:[%s1393] sm:$0xf] %vm216, %v1388
  %1395 = vst.msk [vmem:[%s1393 + $0x4] sm:$0xf] %vm216, %v1390
  %s1396 = scalar_lea.vmem %s0, 40
  %v1397 = vld [vmem:[%s1396] sm:$0xf]
  %v1398 = vld [vmem:[%s1396 + $0x4] sm:$0xf]
  %v1399 = vld [vmem:[%s2] sm:$0xf]
  %v1400 = vld [vmem:[%s2 + $0x4] sm:$0xf]
  %v1401 = vld [vmem:[%s2 + $0x8] sm:$0xf]
  %v1402 = vld [vmem:[%s2 + $0xc] sm:$0xf]
  %v1403 = vunpack.c.l.bf16 %v1397
  %v1404 = vunpack.c.l.bf16 %v1398
  %1405 = vrot.lane.b32.xlu0 %v1251, 64
  %v1406 = vpop.permute.xlu0 %1405
  %v1411 = vunpack.c.l.b16 %v1399
  %v1412 = vunpack.c.l.b16 %v1400
  %v1413 = vunpack.c.l.b16 %v1401
  %v1414 = vunpack.c.l.b16 %v1402
  %v1415 = vpack.c.b16 %v1412, %v1411
  %v1416 = vpack.c.b16 %v1414, %v1413
  %v1420 = vsel %vm103, %v1406, 0
  %1422 = vmatprep.subr.bf16.mxu0 0
  %1423 = vmatpush1.bf16.msra.mxu0 0
  %1424 = vmatprep.subr.bf16.mxu0 0
  %1425 = vmatpush1.bf16.msra.mxu0 0
  %1426 = vmatprep.subr.bf16.mxu0 0
  %1427 = vmatpush1.bf16.msra.mxu0 0
  %1428 = vmatprep.subr.bf16.mxu0 0
  %1429 = vmatpush1.bf16.msra.mxu0 0
  %1430 = vmatprep.subr.bf16.mxu0 0
  %1431 = vmatpush1.bf16.msra.mxu0 0
  %1432 = vmatprep.subr.bf16.mxu0 0
  %1433 = vmatpush1.bf16.msra.mxu0 0
  %1434 = vmatprep.subr.bf16.mxu0 0
  %1435 = vmatpush1.bf16.msra.mxu0 %v1416
  %1436 = vmatprep.subr.bf16.mxu0 0
  %1437 = vmatpush1.bf16.msra.mxu0 %v1415
  %1438 = vmatprep.subr.bf16.mxu0 0
  %1439 = vmatpush2.bf16.msra.mxu0 0
  %1440 = vmatprep.subr.bf16.mxu0 0
  %1441 = vmatpush2.bf16.msra.mxu0 0
  %1442 = vmatprep.subr.bf16.mxu0 0
  %1443 = vmatpush2.bf16.msra.mxu0 0
  %1444 = vmatprep.subr.bf16.mxu0 0
  %1445 = vmatpush2.bf16.msra.mxu0 0
  %1446 = vmatprep.subr.bf16.mxu0 0
  %1447 = vmatpush2.bf16.msra.mxu0 0
  %1448 = vmatprep.subr.bf16.mxu0 0
  %1449 = vmatpush2.bf16.msra.mxu0 0
  %1450 = vmatprep.subr.bf16.mxu0 0
  %1451 = vmatpush2.bf16.msra.mxu0 0
  %1452 = vmatprep.subr.bf16.mxu0 0
  %1453 = vmatpush2.bf16.msra.mxu0 0
  %1454 = vmatprep.mubr.bf16.mxu0 0
  %1455 = vmatmul.mubr.bf16.gmra.mxu0 %v1420
  %v1456 = vpop.f32.mrf.mxu0
  %v1457 = vadd.f32 %v1403, %v1456
  %v1458 = vpop.f32.mrf.mxu0
  %v1459 = vpop.f32.mrf.mxu0
  %v1460 = vadd.f32 %v1404, %v1459
  %v1461 = vpop.f32.mrf.mxu0
  %1462 = vdwg.mxu0
  %v1463 = vxor.u32 %v1457, 2147483648
  %v1464 = vxor.u32 %v1460, 2147483648
  %v1465 = vmul.f32 %v1463, 1.442695
  %v1466 = vpow.pop %v1465
  %v1467 = vmul.f32 %v1464, 1.442695
  %v1468 = vpow.pop %v1467
  %v1469 = vadd.f32 %v1466, 1.0
  %v1470 = vadd.f32 %v1468, 1.0
  %v1471 = vrcp.pop %v1469
  %v1472 = vmul.f32 1.0, %v1471
  %v1473 = vrcp.pop %v1470
  %v1474 = vmul.f32 1.0, %v1473
  %v1475 = vtanh.pop %v1457
  %v1476 = vtanh.pop %v1460
  %v1477 = vmul.f32 %v1472, %v1237
  %v1478 = vmul.f32 %v1474, %v1238
  %1481 = vrot.lane.b32.xlu0 %v1475, 32
  %v1482 = vpop.permute.xlu0 %1481
  %1483 = vrot.lane.b32.xlu0 %v1476, 32
  %v1484 = vpop.permute.xlu0 %1483
  %v1487 = vmul.f32 %v1472, %v1482
  %v1488 = vmul.f32 %v1474, %v1484
  %1491 = vrot.lane.b32.xlu0 %v1487, 32
  %v1492 = vpop.permute.xlu0 %1491
  %1493 = vrot.lane.b32.xlu0 %v1488, 32
  %v1494 = vpop.permute.xlu0 %1493
  %v1497 = vadd.f32 %v1477, %v1492
  %v1498 = vadd.f32 %v1478, %v1494
  %v1499 = vtanh.pop %v1497
  %v1500 = vtanh.pop %v1498
  %1503 = vrot.lane.b32.xlu0 %v1499, 32
  %v1504 = vpop.permute.xlu0 %1503
  %1505 = vrot.lane.b32.xlu0 %v1500, 32
  %v1506 = vpop.permute.xlu0 %1505
  %v1509 = vmul.f32 %v1472, %v1504
  %v1510 = vmul.f32 %v1474, %v1506
  %v1511 = vpack.c.bf16 %v1510, %v1509
  %v1513 = vunpack.c.l.b16 %v1511
  %v1514 = vunpack.c.h.b16 %v1511
  %v1515 = vpack.c.b16 %v1513, %v1513
  %v1516 = vpack.c.b16 %v1514, %v1514
  %1517 = vrot.lane.b32.xlu0 %v1515, 64
  %v1518 = vpop.permute.xlu0 %1517
  %1519 = vrot.lane.b32.xlu0 %v1516, 64
  %v1520 = vpop.permute.xlu0 %1519
  %s1523 = scalar_lea.vmem %s4, 40
  %1524 = vst.msk [vmem:[%s1523] sm:$0xf] %vm216, %v1518
  %1525 = vst.msk [vmem:[%s1523 + $0x4] sm:$0xf] %vm216, %v1520
  %s1526 = scalar_lea.vmem %s48, 16
  %v1527 = vld [vmem:[%s1526] sm:$0xf]
  %v1528 = vld [vmem:[%s1526 + $0x4] sm:$0xf]
  %v1529 = vld [vmem:[%s3] sm:$0xf]
  %v1530 = vld [vmem:[%s3 + $0x4] sm:$0xf]
  %v1531 = vld [vmem:[%s3 + $0x8] sm:$0xf]
  %v1532 = vld [vmem:[%s3 + $0xc] sm:$0xf]
  %v1533 = vunpack.c.l.bf16 %v1527
  %v1534 = vunpack.c.l.bf16 %v1528
  %1535 = vrot.lane.b32.xlu0 %v1381, 64
  %v1536 = vpop.permute.xlu0 %1535
  %v1541 = vunpack.c.l.b16 %v1529
  %v1542 = vunpack.c.l.b16 %v1530
  %v1543 = vunpack.c.l.b16 %v1531
  %v1544 = vunpack.c.l.b16 %v1532
  %v1545 = vpack.c.b16 %v1542, %v1541
  %v1546 = vpack.c.b16 %v1544, %v1543
  %v1550 = vsel %vm103, %v1536, 0
  %1552 = vmatprep.subr.bf16.mxu0 0
  %1553 = vmatpush1.bf16.msra.mxu0 0
  %1554 = vmatprep.subr.bf16.mxu0 0
  %1555 = vmatpush1.bf16.msra.mxu0 0
  %1556 = vmatprep.subr.bf16.mxu0 0
  %1557 = vmatpush1.bf16.msra.mxu0 0
  %1558 = vmatprep.subr.bf16.mxu0 0
  %1559 = vmatpush1.bf16.msra.mxu0 0
  %1560 = vmatprep.subr.bf16.mxu0 0
  %1561 = vmatpush1.bf16.msra.mxu0 0
  %1562 = vmatprep.subr.bf16.mxu0 0
  %1563 = vmatpush1.bf16.msra.mxu0 0
  %1564 = vmatprep.subr.bf16.mxu0 0
  %1565 = vmatpush1.bf16.msra.mxu0 %v1546
  %1566 = vmatprep.subr.bf16.mxu0 0
  %1567 = vmatpush1.bf16.msra.mxu0 %v1545
  %1568 = vmatprep.subr.bf16.mxu0 0
  %1569 = vmatpush2.bf16.msra.mxu0 0
  %1570 = vmatprep.subr.bf16.mxu0 0
  %1571 = vmatpush2.bf16.msra.mxu0 0
  %1572 = vmatprep.subr.bf16.mxu0 0
  %1573 = vmatpush2.bf16.msra.mxu0 0
  %1574 = vmatprep.subr.bf16.mxu0 0
  %1575 = vmatpush2.bf16.msra.mxu0 0
  %1576 = vmatprep.subr.bf16.mxu0 0
  %1577 = vmatpush2.bf16.msra.mxu0 0
  %1578 = vmatprep.subr.bf16.mxu0 0
  %1579 = vmatpush2.bf16.msra.mxu0 0
  %1580 = vmatprep.subr.bf16.mxu0 0
  %1581 = vmatpush2.bf16.msra.mxu0 0
  %1582 = vmatprep.subr.bf16.mxu0 0
  %1583 = vmatpush2.bf16.msra.mxu0 0
  %1584 = vmatprep.mubr.bf16.mxu0 0
  %1585 = vmatmul.mubr.bf16.gmra.mxu0 %v1550
  %v1586 = vpop.f32.mrf.mxu0
  %v1587 = vadd.f32 %v1533, %v1586
  %v1588 = vpop.f32.mrf.mxu0
  %v1589 = vpop.f32.mrf.mxu0
  %v1590 = vadd.f32 %v1534, %v1589
  %v1591 = vpop.f32.mrf.mxu0
  %1592 = vdwg.mxu0
  %v1593 = vxor.u32 %v1587, 2147483648
  %v1594 = vxor.u32 %v1590, 2147483648
  %v1595 = vmul.f32 %v1593, 1.442695
  %v1596 = vpow.pop %v1595
  %v1597 = vmul.f32 %v1594, 1.442695
  %v1598 = vpow.pop %v1597
  %v1599 = vadd.f32 %v1596, 1.0
  %v1600 = vadd.f32 %v1598, 1.0
  %v1601 = vrcp.pop %v1599
  %v1602 = vmul.f32 1.0, %v1601
  %v1603 = vrcp.pop %v1600
  %v1604 = vmul.f32 1.0, %v1603
  %v1605 = vtanh.pop %v1587
  %v1606 = vtanh.pop %v1590
  %v1607 = vmul.f32 %v1602, %v1367
  %v1608 = vmul.f32 %v1604, %v1368
  %1611 = vrot.lane.b32.xlu0 %v1605, 32
  %v1612 = vpop.permute.xlu0 %1611
  %1613 = vrot.lane.b32.xlu0 %v1606, 32
  %v1614 = vpop.permute.xlu0 %1613
  %v1617 = vmul.f32 %v1602, %v1612
  %v1618 = vmul.f32 %v1604, %v1614
  %1621 = vrot.lane.b32.xlu0 %v1617, 32
  %v1622 = vpop.permute.xlu0 %1621
  %1623 = vrot.lane.b32.xlu0 %v1618, 32
  %v1624 = vpop.permute.xlu0 %1623
  %v1627 = vadd.f32 %v1607, %v1622
  %v1628 = vadd.f32 %v1608, %v1624
  %v1629 = vtanh.pop %v1627
  %v1630 = vtanh.pop %v1628
  %1633 = vrot.lane.b32.xlu0 %v1629, 32
  %v1634 = vpop.permute.xlu0 %1633
  %1635 = vrot.lane.b32.xlu0 %v1630, 32
  %v1636 = vpop.permute.xlu0 %1635
  %v1639 = vmul.f32 %v1602, %v1634
  %v1640 = vmul.f32 %v1604, %v1636
  %v1641 = vpack.c.bf16 %v1640, %v1639
  %v1643 = vunpack.c.l.b16 %v1641
  %v1644 = vunpack.c.h.b16 %v1641
  %v1645 = vpack.c.b16 %v1643, %v1643
  %v1646 = vpack.c.b16 %v1644, %v1644
  %1647 = vrot.lane.b32.xlu0 %v1645, 64
  %v1648 = vpop.permute.xlu0 %1647
  %1649 = vrot.lane.b32.xlu0 %v1646, 64
  %v1650 = vpop.permute.xlu0 %1649
  %s1653 = scalar_lea.vmem %s57, 16
  %1654 = vst.msk [vmem:[%s1653] sm:$0xf] %vm216, %v1648
  %1655 = vst.msk [vmem:[%s1653 + $0x4] sm:$0xf] %vm216, %v1650
  %s1656 = scalar_lea.vmem %s0, 48
  %v1657 = vld [vmem:[%s1656] sm:$0xf]
  %v1658 = vld [vmem:[%s1656 + $0x4] sm:$0xf]
  %v1659 = vld [vmem:[%s2] sm:$0xf]
  %v1660 = vld [vmem:[%s2 + $0x4] sm:$0xf]
  %v1661 = vld [vmem:[%s2 + $0x8] sm:$0xf]
  %v1662 = vld [vmem:[%s2 + $0xc] sm:$0xf]
  %v1663 = vunpack.c.l.bf16 %v1657
  %v1664 = vunpack.c.l.bf16 %v1658
  %1665 = vrot.lane.b32.xlu0 %v1511, 64
  %v1666 = vpop.permute.xlu0 %1665
  %v1671 = vunpack.c.l.b16 %v1659
  %v1672 = vunpack.c.l.b16 %v1660
  %v1673 = vunpack.c.l.b16 %v1661
  %v1674 = vunpack.c.l.b16 %v1662
  %v1675 = vpack.c.b16 %v1672, %v1671
  %v1676 = vpack.c.b16 %v1674, %v1673
  %v1680 = vsel %vm103, %v1666, 0
  %1682 = vmatprep.subr.bf16.mxu0 0
  %1683 = vmatpush1.bf16.msra.mxu0 0
  %1684 = vmatprep.subr.bf16.mxu0 0
  %1685 = vmatpush1.bf16.msra.mxu0 0
  %1686 = vmatprep.subr.bf16.mxu0 0
  %1687 = vmatpush1.bf16.msra.mxu0 0
  %1688 = vmatprep.subr.bf16.mxu0 0
  %1689 = vmatpush1.bf16.msra.mxu0 0
  %1690 = vmatprep.subr.bf16.mxu0 0
  %1691 = vmatpush1.bf16.msra.mxu0 0
  %1692 = vmatprep.subr.bf16.mxu0 0
  %1693 = vmatpush1.bf16.msra.mxu0 0
  %1694 = vmatprep.subr.bf16.mxu0 0
  %1695 = vmatpush1.bf16.msra.mxu0 %v1676
  %1696 = vmatprep.subr.bf16.mxu0 0
  %1697 = vmatpush1.bf16.msra.mxu0 %v1675
  %1698 = vmatprep.subr.bf16.mxu0 0
  %1699 = vmatpush2.bf16.msra.mxu0 0
  %1700 = vmatprep.subr.bf16.mxu0 0
  %1701 = vmatpush2.bf16.msra.mxu0 0
  %1702 = vmatprep.subr.bf16.mxu0 0
  %1703 = vmatpush2.bf16.msra.mxu0 0
  %1704 = vmatprep.subr.bf16.mxu0 0
  %1705 = vmatpush2.bf16.msra.mxu0 0
  %1706 = vmatprep.subr.bf16.mxu0 0
  %1707 = vmatpush2.bf16.msra.mxu0 0
  %1708 = vmatprep.subr.bf16.mxu0 0
  %1709 = vmatpush2.bf16.msra.mxu0 0
  %1710 = vmatprep.subr.bf16.mxu0 0
  %1711 = vmatpush2.bf16.msra.mxu0 0
  %1712 = vmatprep.subr.bf16.mxu0 0
  %1713 = vmatpush2.bf16.msra.mxu0 0
  %1714 = vmatprep.mubr.bf16.mxu0 0
  %1715 = vmatmul.mubr.bf16.gmra.mxu0 %v1680
  %v1716 = vpop.f32.mrf.mxu0
  %v1717 = vadd.f32 %v1663, %v1716
  %v1718 = vpop.f32.mrf.mxu0
  %v1719 = vpop.f32.mrf.mxu0
  %v1720 = vadd.f32 %v1664, %v1719
  %v1721 = vpop.f32.mrf.mxu0
  %1722 = vdwg.mxu0
  %v1723 = vxor.u32 %v1717, 2147483648
  %v1724 = vxor.u32 %v1720, 2147483648
  %v1725 = vmul.f32 %v1723, 1.442695
  %v1726 = vpow.pop %v1725
  %v1727 = vmul.f32 %v1724, 1.442695
  %v1728 = vpow.pop %v1727
  %v1729 = vadd.f32 %v1726, 1.0
  %v1730 = vadd.f32 %v1728, 1.0
  %v1731 = vrcp.pop %v1729
  %v1732 = vmul.f32 1.0, %v1731
  %v1733 = vrcp.pop %v1730
  %v1734 = vmul.f32 1.0, %v1733
  %v1735 = vtanh.pop %v1717
  %v1736 = vtanh.pop %v1720
  %v1737 = vmul.f32 %v1732, %v1497
  %v1738 = vmul.f32 %v1734, %v1498
  %1741 = vrot.lane.b32.xlu0 %v1735, 32
  %v1742 = vpop.permute.xlu0 %1741
  %1743 = vrot.lane.b32.xlu0 %v1736, 32
  %v1744 = vpop.permute.xlu0 %1743
  %v1747 = vmul.f32 %v1732, %v1742
  %v1748 = vmul.f32 %v1734, %v1744
  %1751 = vrot.lane.b32.xlu0 %v1747, 32
  %v1752 = vpop.permute.xlu0 %1751
  %1753 = vrot.lane.b32.xlu0 %v1748, 32
  %v1754 = vpop.permute.xlu0 %1753
  %v1757 = vadd.f32 %v1737, %v1752
  %v1758 = vadd.f32 %v1738, %v1754
  %v1759 = vtanh.pop %v1757
  %v1760 = vtanh.pop %v1758
  %1763 = vrot.lane.b32.xlu0 %v1759, 32
  %v1764 = vpop.permute.xlu0 %1763
  %1765 = vrot.lane.b32.xlu0 %v1760, 32
  %v1766 = vpop.permute.xlu0 %1765
  %v1769 = vmul.f32 %v1732, %v1764
  %v1770 = vmul.f32 %v1734, %v1766
  %v1771 = vpack.c.bf16 %v1770, %v1769
  %v1773 = vunpack.c.l.b16 %v1771
  %v1774 = vunpack.c.h.b16 %v1771
  %v1775 = vpack.c.b16 %v1773, %v1773
  %v1776 = vpack.c.b16 %v1774, %v1774
  %1777 = vrot.lane.b32.xlu0 %v1775, 64
  %v1778 = vpop.permute.xlu0 %1777
  %1779 = vrot.lane.b32.xlu0 %v1776, 64
  %v1780 = vpop.permute.xlu0 %1779
  %s1783 = scalar_lea.vmem %s4, 48
  %1784 = vst.msk [vmem:[%s1783] sm:$0xf] %vm216, %v1778
  %1785 = vst.msk [vmem:[%s1783 + $0x4] sm:$0xf] %vm216, %v1780
  %s1786 = scalar_lea.vmem %s48, 8
  %v1787 = vld [vmem:[%s1786] sm:$0xf]
  %v1788 = vld [vmem:[%s1786 + $0x4] sm:$0xf]
  %v1789 = vld [vmem:[%s3] sm:$0xf]
  %v1790 = vld [vmem:[%s3 + $0x4] sm:$0xf]
  %v1791 = vld [vmem:[%s3 + $0x8] sm:$0xf]
  %v1792 = vld [vmem:[%s3 + $0xc] sm:$0xf]
  %v1793 = vunpack.c.l.bf16 %v1787
  %v1794 = vunpack.c.l.bf16 %v1788
  %1795 = vrot.lane.b32.xlu0 %v1641, 64
  %v1796 = vpop.permute.xlu0 %1795
  %v1801 = vunpack.c.l.b16 %v1789
  %v1802 = vunpack.c.l.b16 %v1790
  %v1803 = vunpack.c.l.b16 %v1791
  %v1804 = vunpack.c.l.b16 %v1792
  %v1805 = vpack.c.b16 %v1802, %v1801
  %v1806 = vpack.c.b16 %v1804, %v1803
  %v1810 = vsel %vm103, %v1796, 0
  %1812 = vmatprep.subr.bf16.mxu0 0
  %1813 = vmatpush1.bf16.msra.mxu0 0
  %1814 = vmatprep.subr.bf16.mxu0 0
  %1815 = vmatpush1.bf16.msra.mxu0 0
  %1816 = vmatprep.subr.bf16.mxu0 0
  %1817 = vmatpush1.bf16.msra.mxu0 0
  %1818 = vmatprep.subr.bf16.mxu0 0
  %1819 = vmatpush1.bf16.msra.mxu0 0
  %1820 = vmatprep.subr.bf16.mxu0 0
  %1821 = vmatpush1.bf16.msra.mxu0 0
  %1822 = vmatprep.subr.bf16.mxu0 0
  %1823 = vmatpush1.bf16.msra.mxu0 0
  %1824 = vmatprep.subr.bf16.mxu0 0
  %1825 = vmatpush1.bf16.msra.mxu0 %v1806
  %1826 = vmatprep.subr.bf16.mxu0 0
  %1827 = vmatpush1.bf16.msra.mxu0 %v1805
  %1828 = vmatprep.subr.bf16.mxu0 0
  %1829 = vmatpush2.bf16.msra.mxu0 0
  %1830 = vmatprep.subr.bf16.mxu0 0
  %1831 = vmatpush2.bf16.msra.mxu0 0
  %1832 = vmatprep.subr.bf16.mxu0 0
  %1833 = vmatpush2.bf16.msra.mxu0 0
  %1834 = vmatprep.subr.bf16.mxu0 0
  %1835 = vmatpush2.bf16.msra.mxu0 0
  %1836 = vmatprep.subr.bf16.mxu0 0
  %1837 = vmatpush2.bf16.msra.mxu0 0
  %1838 = vmatprep.subr.bf16.mxu0 0
  %1839 = vmatpush2.bf16.msra.mxu0 0
  %1840 = vmatprep.subr.bf16.mxu0 0
  %1841 = vmatpush2.bf16.msra.mxu0 0
  %1842 = vmatprep.subr.bf16.mxu0 0
  %1843 = vmatpush2.bf16.msra.mxu0 0
  %1844 = vmatprep.mubr.bf16.mxu0 0
  %1845 = vmatmul.mubr.bf16.gmra.mxu0 %v1810
  %v1846 = vpop.f32.mrf.mxu0
  %v1847 = vadd.f32 %v1793, %v1846
  %v1848 = vpop.f32.mrf.mxu0
  %v1849 = vpop.f32.mrf.mxu0
  %v1850 = vadd.f32 %v1794, %v1849
  %v1851 = vpop.f32.mrf.mxu0
  %1852 = vdwg.mxu0
  %v1853 = vxor.u32 %v1847, 2147483648
  %v1854 = vxor.u32 %v1850, 2147483648
  %v1855 = vmul.f32 %v1853, 1.442695
  %v1856 = vpow.pop %v1855
  %v1857 = vmul.f32 %v1854, 1.442695
  %v1858 = vpow.pop %v1857
  %v1859 = vadd.f32 %v1856, 1.0
  %v1860 = vadd.f32 %v1858, 1.0
  %v1861 = vrcp.pop %v1859
  %v1862 = vmul.f32 1.0, %v1861
  %v1863 = vrcp.pop %v1860
  %v1864 = vmul.f32 1.0, %v1863
  %v1865 = vtanh.pop %v1847
  %v1866 = vtanh.pop %v1850
  %v1867 = vmul.f32 %v1862, %v1627
  %v1868 = vmul.f32 %v1864, %v1628
  %1871 = vrot.lane.b32.xlu0 %v1865, 32
  %v1872 = vpop.permute.xlu0 %1871
  %1873 = vrot.lane.b32.xlu0 %v1866, 32
  %v1874 = vpop.permute.xlu0 %1873
  %v1877 = vmul.f32 %v1862, %v1872
  %v1878 = vmul.f32 %v1864, %v1874
  %1881 = vrot.lane.b32.xlu0 %v1877, 32
  %v1882 = vpop.permute.xlu0 %1881
  %1883 = vrot.lane.b32.xlu0 %v1878, 32
  %v1884 = vpop.permute.xlu0 %1883
  %v1887 = vadd.f32 %v1867, %v1882
  %v1888 = vadd.f32 %v1868, %v1884
  %v1889 = vtanh.pop %v1887
  %v1890 = vtanh.pop %v1888
  %1893 = vrot.lane.b32.xlu0 %v1889, 32
  %v1894 = vpop.permute.xlu0 %1893
  %1895 = vrot.lane.b32.xlu0 %v1890, 32
  %v1896 = vpop.permute.xlu0 %1895
  %v1899 = vmul.f32 %v1862, %v1894
  %v1900 = vmul.f32 %v1864, %v1896
  %v1901 = vpack.c.bf16 %v1900, %v1899
  %v1903 = vunpack.c.l.b16 %v1901
  %v1904 = vunpack.c.h.b16 %v1901
  %v1905 = vpack.c.b16 %v1903, %v1903
  %v1906 = vpack.c.b16 %v1904, %v1904
  %1907 = vrot.lane.b32.xlu0 %v1905, 64
  %v1908 = vpop.permute.xlu0 %1907
  %1909 = vrot.lane.b32.xlu0 %v1906, 64
  %v1910 = vpop.permute.xlu0 %1909
  %s1913 = scalar_lea.vmem %s57, 8
  %1914 = vst.msk [vmem:[%s1913] sm:$0xf] %vm216, %v1908
  %1915 = vst.msk [vmem:[%s1913 + $0x4] sm:$0xf] %vm216, %v1910
  %s1916 = scalar_lea.vmem %s0, 56
  %v1917 = vld [vmem:[%s1916] sm:$0xf]
  %v1918 = vld [vmem:[%s1916 + $0x4] sm:$0xf]
  %v1919 = vld [vmem:[%s2] sm:$0xf]
  %v1920 = vld [vmem:[%s2 + $0x4] sm:$0xf]
  %v1921 = vld [vmem:[%s2 + $0x8] sm:$0xf]
  %v1922 = vld [vmem:[%s2 + $0xc] sm:$0xf]
  %v1923 = vunpack.c.l.bf16 %v1917
  %v1924 = vunpack.c.l.bf16 %v1918
  %1925 = vrot.lane.b32.xlu0 %v1771, 64
  %v1926 = vpop.permute.xlu0 %1925
  %v1931 = vunpack.c.l.b16 %v1919
  %v1932 = vunpack.c.l.b16 %v1920
  %v1933 = vunpack.c.l.b16 %v1921
  %v1934 = vunpack.c.l.b16 %v1922
  %v1935 = vpack.c.b16 %v1932, %v1931
  %v1936 = vpack.c.b16 %v1934, %v1933
  %v1940 = vsel %vm103, %v1926, 0
  %1942 = vmatprep.subr.bf16.mxu0 0
  %1943 = vmatpush1.bf16.msra.mxu0 0
  %1944 = vmatprep.subr.bf16.mxu0 0
  %1945 = vmatpush1.bf16.msra.mxu0 0
  %1946 = vmatprep.subr.bf16.mxu0 0
  %1947 = vmatpush1.bf16.msra.mxu0 0
  %1948 = vmatprep.subr.bf16.mxu0 0
  %1949 = vmatpush1.bf16.msra.mxu0 0
  %1950 = vmatprep.subr.bf16.mxu0 0
  %1951 = vmatpush1.bf16.msra.mxu0 0
  %1952 = vmatprep.subr.bf16.mxu0 0
  %1953 = vmatpush1.bf16.msra.mxu0 0
  %1954 = vmatprep.subr.bf16.mxu0 0
  %1955 = vmatpush1.bf16.msra.mxu0 %v1936
  %1956 = vmatprep.subr.bf16.mxu0 0
  %1957 = vmatpush1.bf16.msra.mxu0 %v1935
  %1958 = vmatprep.subr.bf16.mxu0 0
  %1959 = vmatpush2.bf16.msra.mxu0 0
  %1960 = vmatprep.subr.bf16.mxu0 0
  %1961 = vmatpush2.bf16.msra.mxu0 0
  %1962 = vmatprep.subr.bf16.mxu0 0
  %1963 = vmatpush2.bf16.msra.mxu0 0
  %1964 = vmatprep.subr.bf16.mxu0 0
  %1965 = vmatpush2.bf16.msra.mxu0 0
  %1966 = vmatprep.subr.bf16.mxu0 0
  %1967 = vmatpush2.bf16.msra.mxu0 0
  %1968 = vmatprep.subr.bf16.mxu0 0
  %1969 = vmatpush2.bf16.msra.mxu0 0
  %1970 = vmatprep.subr.bf16.mxu0 0
  %1971 = vmatpush2.bf16.msra.mxu0 0
  %1972 = vmatprep.subr.bf16.mxu0 0
  %1973 = vmatpush2.bf16.msra.mxu0 0
  %1974 = vmatprep.mubr.bf16.mxu0 0
  %1975 = vmatmul.mubr.bf16.gmra.mxu0 %v1940
  %v1976 = vpop.f32.mrf.mxu0
  %v1977 = vadd.f32 %v1923, %v1976
  %v1978 = vpop.f32.mrf.mxu0
  %v1979 = vpop.f32.mrf.mxu0
  %v1980 = vadd.f32 %v1924, %v1979
  %v1981 = vpop.f32.mrf.mxu0
  %1982 = vdwg.mxu0
  %v1983 = vxor.u32 %v1977, 2147483648
  %v1984 = vxor.u32 %v1980, 2147483648
  %v1985 = vmul.f32 %v1983, 1.442695
  %v1986 = vpow.pop %v1985
  %v1987 = vmul.f32 %v1984, 1.442695
  %v1988 = vpow.pop %v1987
  %v1989 = vadd.f32 %v1986, 1.0
  %v1990 = vadd.f32 %v1988, 1.0
  %v1991 = vrcp.pop %v1989
  %v1992 = vmul.f32 1.0, %v1991
  %v1993 = vrcp.pop %v1990
  %v1994 = vmul.f32 1.0, %v1993
  %v1995 = vtanh.pop %v1977
  %v1996 = vtanh.pop %v1980
  %v1997 = vmul.f32 %v1992, %v1757
  %v1998 = vmul.f32 %v1994, %v1758
  %2001 = vrot.lane.b32.xlu0 %v1995, 32
  %v2002 = vpop.permute.xlu0 %2001
  %2003 = vrot.lane.b32.xlu0 %v1996, 32
  %v2004 = vpop.permute.xlu0 %2003
  %v2007 = vmul.f32 %v1992, %v2002
  %v2008 = vmul.f32 %v1994, %v2004
  %2011 = vrot.lane.b32.xlu0 %v2007, 32
  %v2012 = vpop.permute.xlu0 %2011
  %2013 = vrot.lane.b32.xlu0 %v2008, 32
  %v2014 = vpop.permute.xlu0 %2013
  %v2017 = vadd.f32 %v1997, %v2012
  %v2018 = vadd.f32 %v1998, %v2014
  %v2019 = vtanh.pop %v2017
  %v2020 = vtanh.pop %v2018
  %2023 = vrot.lane.b32.xlu0 %v2019, 32
  %v2024 = vpop.permute.xlu0 %2023
  %2025 = vrot.lane.b32.xlu0 %v2020, 32
  %v2026 = vpop.permute.xlu0 %2025
  %v2029 = vmul.f32 %v1992, %v2024
  %v2030 = vmul.f32 %v1994, %v2026
  %v2031 = vpack.c.bf16 %v2030, %v2029
  %v2033 = vunpack.c.l.b16 %v2031
  %v2034 = vunpack.c.h.b16 %v2031
  %v2035 = vpack.c.b16 %v2033, %v2033
  %v2036 = vpack.c.b16 %v2034, %v2034
  %2037 = vrot.lane.b32.xlu0 %v2035, 64
  %v2038 = vpop.permute.xlu0 %2037
  %2039 = vrot.lane.b32.xlu0 %v2036, 64
  %v2040 = vpop.permute.xlu0 %2039
  %s2043 = scalar_lea.vmem %s4, 56
  %2044 = vst.msk [vmem:[%s2043] sm:$0xf] %vm216, %v2038
  %2045 = vst.msk [vmem:[%s2043 + $0x4] sm:$0xf] %vm216, %v2040
  %v2046 = vld [vmem:[%s48] sm:$0xf]
  %v2047 = vld [vmem:[%s48 + $0x4] sm:$0xf]
  %v2048 = vld [vmem:[%s3] sm:$0xf]
  %v2049 = vld [vmem:[%s3 + $0x4] sm:$0xf]
  %v2050 = vld [vmem:[%s3 + $0x8] sm:$0xf]
  %v2051 = vld [vmem:[%s3 + $0xc] sm:$0xf]
  %v2052 = vunpack.c.l.bf16 %v2046
  %v2053 = vunpack.c.l.bf16 %v2047
  %2054 = vrot.lane.b32.xlu0 %v1901, 64
  %v2055 = vpop.permute.xlu0 %2054
  %v2060 = vunpack.c.l.b16 %v2048
  %v2061 = vunpack.c.l.b16 %v2049
  %v2062 = vunpack.c.l.b16 %v2050
  %v2063 = vunpack.c.l.b16 %v2051
  %v2064 = vpack.c.b16 %v2061, %v2060
  %v2065 = vpack.c.b16 %v2063, %v2062
  %v2069 = vsel %vm103, %v2055, 0
  %2071 = vmatprep.subr.bf16.mxu0 0
  %2072 = vmatpush1.bf16.msra.mxu0 0
  %2073 = vmatprep.subr.bf16.mxu0 0
  %2074 = vmatpush1.bf16.msra.mxu0 0
  %2075 = vmatprep.subr.bf16.mxu0 0
  %2076 = vmatpush1.bf16.msra.mxu0 0
  %2077 = vmatprep.subr.bf16.mxu0 0
  %2078 = vmatpush1.bf16.msra.mxu0 0
  %2079 = vmatprep.subr.bf16.mxu0 0
  %2080 = vmatpush1.bf16.msra.mxu0 0
  %2081 = vmatprep.subr.bf16.mxu0 0
  %2082 = vmatpush1.bf16.msra.mxu0 0
  %2083 = vmatprep.subr.bf16.mxu0 0
  %2084 = vmatpush1.bf16.msra.mxu0 %v2065
  %2085 = vmatprep.subr.bf16.mxu0 0
  %2086 = vmatpush1.bf16.msra.mxu0 %v2064
  %2087 = vmatprep.subr.bf16.mxu0 0
  %2088 = vmatpush2.bf16.msra.mxu0 0
  %2089 = vmatprep.subr.bf16.mxu0 0
  %2090 = vmatpush2.bf16.msra.mxu0 0
  %2091 = vmatprep.subr.bf16.mxu0 0
  %2092 = vmatpush2.bf16.msra.mxu0 0
  %2093 = vmatprep.subr.bf16.mxu0 0
  %2094 = vmatpush2.bf16.msra.mxu0 0
  %2095 = vmatprep.subr.bf16.mxu0 0
  %2096 = vmatpush2.bf16.msra.mxu0 0
  %2097 = vmatprep.subr.bf16.mxu0 0
  %2098 = vmatpush2.bf16.msra.mxu0 0
  %2099 = vmatprep.subr.bf16.mxu0 0
  %2100 = vmatpush2.bf16.msra.mxu0 0
  %2101 = vmatprep.subr.bf16.mxu0 0
  %2102 = vmatpush2.bf16.msra.mxu0 0
  %2103 = vmatprep.mubr.bf16.mxu0 0
  %2104 = vmatmul.mubr.bf16.gmra.mxu0 %v2069
  %v2105 = vpop.f32.mrf.mxu0
  %v2106 = vadd.f32 %v2052, %v2105
  %v2107 = vpop.f32.mrf.mxu0
  %v2108 = vpop.f32.mrf.mxu0
  %v2109 = vadd.f32 %v2053, %v2108
  %v2110 = vpop.f32.mrf.mxu0
  %2111 = vdwg.mxu0
  %v2112 = vxor.u32 %v2106, 2147483648
  %v2113 = vxor.u32 %v2109, 2147483648
  %v2114 = vmul.f32 %v2112, 1.442695
  %v2115 = vpow.pop %v2114
  %v2116 = vmul.f32 %v2113, 1.442695
  %v2117 = vpow.pop %v2116
  %v2118 = vadd.f32 %v2115, 1.0
  %v2119 = vadd.f32 %v2117, 1.0
  %v2120 = vrcp.pop %v2118
  %v2121 = vmul.f32 1.0, %v2120
  %v2122 = vrcp.pop %v2119
  %v2123 = vmul.f32 1.0, %v2122
  %v2124 = vtanh.pop %v2106
  %v2125 = vtanh.pop %v2109
  %v2126 = vmul.f32 %v2121, %v1887
  %v2127 = vmul.f32 %v2123, %v1888
  %2130 = vrot.lane.b32.xlu0 %v2124, 32
  %v2131 = vpop.permute.xlu0 %2130
  %2132 = vrot.lane.b32.xlu0 %v2125, 32
  %v2133 = vpop.permute.xlu0 %2132
  %v2136 = vmul.f32 %v2121, %v2131
  %v2137 = vmul.f32 %v2123, %v2133
  %2140 = vrot.lane.b32.xlu0 %v2136, 32
  %v2141 = vpop.permute.xlu0 %2140
  %2142 = vrot.lane.b32.xlu0 %v2137, 32
  %v2143 = vpop.permute.xlu0 %2142
  %v2146 = vadd.f32 %v2126, %v2141
  %v2147 = vadd.f32 %v2127, %v2143
  %v2148 = vtanh.pop %v2146
  %v2149 = vtanh.pop %v2147
  %2152 = vrot.lane.b32.xlu0 %v2148, 32
  %v2153 = vpop.permute.xlu0 %2152
  %2154 = vrot.lane.b32.xlu0 %v2149, 32
  %v2155 = vpop.permute.xlu0 %2154
  %v2158 = vmul.f32 %v2121, %v2153
  %v2159 = vmul.f32 %v2123, %v2155
  %v2160 = vpack.c.bf16 %v2159, %v2158
  %v2162 = vunpack.c.l.b16 %v2160
  %v2163 = vunpack.c.h.b16 %v2160
  %v2164 = vpack.c.b16 %v2162, %v2162
  %v2165 = vpack.c.b16 %v2163, %v2163
  %2166 = vrot.lane.b32.xlu0 %v2164, 64
  %v2167 = vpop.permute.xlu0 %2166
  %2168 = vrot.lane.b32.xlu0 %v2165, 64
  %v2169 = vpop.permute.xlu0 %2168
  %2172 = vst.msk [vmem:[%s57] sm:$0xf] %vm216, %v2167
  %2173 = vst.msk [vmem:[%s57 + $0x4] sm:$0xf] %vm216, %v2169
  %2176 = vrot.lane.b32.xlu0 %v2029, 64
  %v2177 = vpop.permute.xlu0 %2176
  %2178 = vrot.lane.b32.xlu0 %v2030, 64
  %v2179 = vpop.permute.xlu0 %2178
  %2182 = vst.msk [vmem:[#allocation2] sm:$0xff] %vm103, %v2177
  %2183 = vst.msk [vmem:[#allocation2 + $0x8] sm:$0xff] %vm103, %v2179
  %2186 = vrot.lane.b32.xlu0 %v2017, 96
  %v2187 = vpop.permute.xlu0 %2186
  %2188 = vrot.lane.b32.xlu0 %v2018, 96
  %v2189 = vpop.permute.xlu0 %2188
  %2192 = vst.msk [vmem:[#allocation3] sm:$0xff] %vm103, %v2187
  %2193 = vst.msk [vmem:[#allocation3 + $0x8] sm:$0xff] %vm103, %v2189
  %2196 = vrot.lane.b32.xlu0 %v2158, 64
  %v2197 = vpop.permute.xlu0 %2196
  %2198 = vrot.lane.b32.xlu0 %v2159, 64
  %v2199 = vpop.permute.xlu0 %2198
  %2202 = vst.msk [vmem:[#allocation4] sm:$0xff] %vm103, %v2197
  %2203 = vst.msk [vmem:[#allocation4 + $0x8] sm:$0xff] %vm103, %v2199
  %2206 = vrot.lane.b32.xlu0 %v2146, 96
  %v2207 = vpop.permute.xlu0 %2206
  %2208 = vrot.lane.b32.xlu0 %v2147, 96
  %v2209 = vpop.permute.xlu0 %2208
  %2212 = vst.msk [vmem:[#allocation5] sm:$0xff] %vm103, %v2207
  %2213 = vst.msk [vmem:[#allocation5 + $0x8] sm:$0xff] %vm103, %v2209
  %s2214 = ssub.s32 0, 0
  %s2215 = smul.u32 8, %s2214
  %p2216 = scmp.lt.s32.totalorder %s2215, 7
  %s2217 = scalar_select %p2216, %s2215, 7
  %s2218 = smul.addr %s2217, 2
  %s2219 = smul.addr %s2218, 4
  %s2220 = scalar_lea.vmem %s5, %s2219
  // Predicated region
  $region22: #{bilstm_encoder.2} parent=0 // pred_check
    _
  $region23: #{bilstm_encoder.2} parent=0 // pred_check_branch
    %2222 = sbr.rel (0) target = $region25
  $region24: #{bilstm_encoder.2} parent=0 // pred_region
    _
  $region25: #{bilstm_encoder.2} parent=0 // pred_fallthru
    _
  // Predicated region
  $region26: #{bilstm_encoder.2} parent=0 // pred_check
    _
  $region27: #{bilstm_encoder.2} parent=0 // pred_check_branch
    %2224 = sbr.rel (0) target = $region29
  $region28: #{bilstm_encoder.2} parent=0 // pred_region
    %s2225 = ssub.s32 0, 0
    %s2226 = smul.u32 8, %s2225
  $region29: #{bilstm_encoder.2} parent=0 // pred_fallthru
    _
  // Predicated region
  $region30: #{bilstm_encoder.2} parent=0 // pred_check
    _
  $region31: #{bilstm_encoder.2} parent=0 // pred_check_branch
    %2228 = sbr.rel (0) target = $region33
  $region32: #{bilstm_encoder.2} parent=0 // pred_region
    _
  $region33: #{bilstm_encoder.2} parent=0 // pred_fallthru
    _
  // Predicated region
  $region34: #{bilstm_encoder.2} parent=0 // pred_check
    _
  $region35: #{bilstm_encoder.2} parent=0 // pred_check_branch
    %2230 = sbr.rel (0) target = $region37
  $region36: #{bilstm_encoder.2} parent=0 // pred_region
    %s2231 = ssub.s32 0, 0
    %s2232 = smul.u32 8, %s2231
    %p2233 = scmp.lt.s32.totalorder %s2232, 7
    %s2234 = scalar_select %p2233, %s2232, 7
    %s2235 = smul.addr %s2234, 2
    %s2236 = smul.addr %s2235, 4
    %s2237 = scalar_lea.vmem %s5, %s2236
  $region37: #{bilstm_encoder.2} parent=0 // pred_fallthru
    _

</llo_original>
